<compile_context>
chip_gen: v7x
topology: tpu7x:2x2x1
jax: 0.10.0
libtpu: 0.0.40
codegen_flags: <defaults>
</compile_context>

<pallas_src>
import functools

import numpy as np
import jax
import jax.numpy as jnp
from jax.experimental import pallas as pl
from jax.experimental.pallas import tpu as pltpu

NEG_INF = -1e32
LN_EPS = 1e-5  # PyTorch LayerNorm default


# ----------------------------------------------------------------------------
# small math helpers (usable both inside the kernels and in the pure-JAX ref)
# ----------------------------------------------------------------------------
def _erf_approx(x):
    # Abramowitz & Stegun 7.1.26 (max abs err ~1.5e-7) -> exact-GELU to fp32-ish.
    a1, a2, a3, a4, a5 = 0.254829592, -0.284496736, 1.421413741, -1.453152027, 1.061405429
    p = 0.3275911
    sgn = jnp.where(x >= 0.0, 1.0, -1.0)
    ax = jnp.abs(x)
    t = 1.0 / (1.0 + p * ax)
    poly = ((((a5 * t + a4) * t + a3) * t + a2) * t + a1) * t
    return sgn * (1.0 - poly * jnp.exp(-ax * ax))


def _gelu_exact(x):
    return 0.5 * x * (1.0 + _erf_approx(x * np.float32(1.0 / np.sqrt(2.0))))


def _layernorm(x, gamma, beta):
    mean = jnp.mean(x, axis=-1, keepdims=True)
    xc = x - mean
    var = jnp.mean(xc * xc, axis=-1, keepdims=True)
    return xc * jax.lax.rsqrt(var + LN_EPS) * gamma + beta


def _softmax_last(x):
    m = jnp.max(x, axis=-1, keepdims=True)
    e = jnp.exp(x - m)
    return e / jnp.sum(e, axis=-1, keepdims=True)


# ----------------------------------------------------------------------------
# Kernel 1: projections + individual attention + out_proj + residual + LN1
# ----------------------------------------------------------------------------
def _attention_block_kernel(n_heads, d_k,
                            q_ref, k_ref, v_ref, mask_ref,
                            wq_ref, bq_ref, wk_ref, bk_ref, wv_ref, bv_ref,
                            wo_ref, bo_ref, neg_gamma_ref,
                            ln1_g_ref, ln1_b_ref,
                            x1_ref, attn_ref,
                            concat_scratch):
    q_in = q_ref[0, :, :]        # (S, D)
    k_in = k_ref[0, :, :]
    v_in = v_ref[0, :, :]
    S = q_in.shape[0]

    # Linear projections (weights pre-transposed to (in, out)).
    q_p = jnp.dot(q_in, wq_ref[...], preferred_element_type=jnp.float32) + bq_ref[...]
    k_p = jnp.dot(k_in, wk_ref[...], preferred_element_type=jnp.float32) + bk_ref[...]
    v_p = jnp.dot(v_in, wv_ref[...], preferred_element_type=jnp.float32) + bv_ref[...]

    maskf = mask_ref[...]                    # (S, S) 1.0 / 0.0
    mask_on = maskf > 0.5

    r_idx = jax.lax.broadcasted_iota(jnp.int32, (S, S), 0)   # query index
    c_idx = jax.lax.broadcasted_iota(jnp.int32, (S, S), 1)   # key index
    pos_eff = jnp.abs((c_idx - r_idx).astype(jnp.float32))   # |key - query|
    # gt_mat[j, i] = 1 if j > i  ->  p @ gt_mat == disttotal - distcum  (no cumsum)
    gt_mat = (r_idx > c_idx).astype(jnp.float32)

    inv_sqrt_dk = np.float32(np.sqrt(d_k))

    for hi in range(n_heads):
        sl = slice(hi * d_k, (hi + 1) * d_k)
        q_h = q_p[:, sl]
        k_h = k_p[:, sl]
        v_h = v_p[:, sl]

        # scores = q @ k^T / sqrt(d_k)   (trans_b dot avoids explicit transpose)
        scores = jax.lax.dot_general(
            q_h, k_h, (((1,), (1,)), ((), ())),
            preferred_element_type=jnp.float32) / inv_sqrt_dk

        # "no-grad" distance pass: masked softmax, zeroed at masked positions.
        p = _softmax_last(jnp.where(mask_on, scores, NEG_INF)) * maskf
        rest = jnp.dot(p, gt_mat, preferred_element_type=jnp.float32)  # sum_{j>i} p
        dist = jnp.sqrt(jnp.maximum(rest * pos_eff, 0.0))

        g = neg_gamma_ref[:, hi:hi + 1]                   # (1,1) == -softplus(gamma_h)
        total_effect = jnp.clip(jnp.exp(dist * g), 1e-5, 1e5)

        scores2 = jnp.where(mask_on, scores * total_effect, NEG_INF)
        attn_h = _softmax_last(scores2)
        attn_ref[0, hi, :, :] = attn_h

        # TODO(synk): training-mode attention dropout not implemented (eval identity).
        out_h = jnp.dot(attn_h, v_h, preferred_element_type=jnp.float32)
        concat_scratch[:, sl] = out_h

    concat = concat_scratch[...]                                       # (S, D)
    attn_out = jnp.dot(concat, wo_ref[...],
                       preferred_element_type=jnp.float32) + bo_ref[...]

    # residual (dropout1 identity) + LayerNorm1
    x = q_in + attn_out
    x1_ref[0, :, :] = _layernorm(x, ln1_g_ref[...], ln1_b_ref[...])


# ----------------------------------------------------------------------------
# Kernel 2: position-wise FFN + residual + LN2 over flattened (B*S, D) rows
# ----------------------------------------------------------------------------
def _ffn_block_kernel(x_ref, w1_ref, b1_ref, w2_ref, b2_ref,
                      ln2_g_ref, ln2_b_ref, out_ref):
    x = x_ref[...]                                                     # (TR, D)
    h = jnp.dot(x, w1_ref[...], preferred_element_type=jnp.float32) + b1_ref[...]
    h = _gelu_exact(h)
    # TODO(synk): training-mode dropout between GELU and linear2 not implemented.
    ff = jnp.dot(h, w2_ref[...], preferred_element_type=jnp.float32) + b2_ref[...]
    out_ref[...] = _layernorm(x + ff, ln2_g_ref[...], ln2_b_ref[...])


def _pick_row_tile(n):
    for t in (512, 256, 128, 64, 32, 16, 8):
        if n % t == 0:
            return t
    return n


# ----------------------------------------------------------------------------
# Wrapper
# ----------------------------------------------------------------------------
def prepare_params(raw, kq_same):
    """One-time preparation: transpose weights to (in,out), cast, fold softplus."""
    H = raw["gammas"].shape[0]
    kq_same_b = (kq_same == 1)
    wq = raw["wk"] if kq_same_b else raw["wq"]
    bq = raw["bk"] if kq_same_b else raw["bq"]
    f32 = lambda a: jnp.asarray(a, jnp.float32)
    return {
        "n_heads": H,
        "wq_t": f32(wq).T,           "bq": f32(bq).reshape(1, -1),
        "wk_t": f32(raw["wk"]).T,    "bk": f32(raw["bk"]).reshape(1, -1),
        "wv_t": f32(raw["wv"]).T,    "bv": f32(raw["bv"]).reshape(1, -1),
        "wo_t": f32(raw["wo"]).T,    "bo": f32(raw["bo"]).reshape(1, -1),
        "neg_gamma": (-jax.nn.softplus(f32(raw["gammas"]))).reshape(1, H),
        "ln1_g": f32(raw["ln1_g"]).reshape(1, -1), "ln1_b": f32(raw["ln1_b"]).reshape(1, -1),
        "w1_t": f32(raw["w1"]).T,    "b1": f32(raw["b1"]).reshape(1, -1),
        "w2_t": f32(raw["w2"]).T,    "b2": f32(raw["b2"]).reshape(1, -1),
        "ln2_g": f32(raw["ln2_g"]).reshape(1, -1), "ln2_b": f32(raw["ln2_b"]).reshape(1, -1),
    }


def maskt_transformer_layer(params, mask_flag, query, key, values, apply_pos=True):
    B, S, D = query.shape
    H = params["n_heads"]
    d_k = D // H
    d_ff = params["w1_t"].shape[1]

    # src_mask built host-side from the Python int flag (matches nopeek_mask logic).
    if mask_flag == 0 or mask_flag == 1:
        m = (np.triu(np.ones((S, S), dtype=np.float32), k=int(mask_flag)) == 0)
        mask2d = jnp.asarray(m.astype(np.float32))
    else:
        mask2d = jnp.ones((S, S), dtype=jnp.float32)

    def full(*shape):
        return pl.BlockSpec(shape, lambda b: (0,) * len(shape))

    attn_kernel = functools.partial(_attention_block_kernel, H, d_k)

    flops_attn = B * (8 * S * D * D + H * (4 * S * S * d_k + 2 * S * S * S) + 20 * S * D)
    trans_attn = B * (3 * H * S * S + 2 * S)
    bytes_attn = 4 * (4 * B * S * D + B * H * S * S + S * S + 4 * D * D + 6 * D + H)

    x1, attn = pl.pallas_call(
        attn_kernel,
        out_shape=(jax.ShapeDtypeStruct((B, S, D), jnp.float32),
                   jax.ShapeDtypeStruct((B, H, S, S), jnp.float32)),
        grid=(B,),
        in_specs=[
            pl.BlockSpec((1, S, D), lambda b: (b, 0, 0)),   # query
            pl.BlockSpec((1, S, D), lambda b: (b, 0, 0)),   # key
            pl.BlockSpec((1, S, D), lambda b: (b, 0, 0)),   # values
            full(S, S),                                     # mask (1/0)
            full(D, D), full(1, D),                         # Wq^T, bq
            full(D, D), full(1, D),                         # Wk^T, bk
            full(D, D), full(1, D),                         # Wv^T, bv
            full(D, D), full(1, D),                         # Wo^T, bo
            full(1, H),                                     # -softplus(gamma)
            full(1, D), full(1, D),                         # LN1 gamma / beta
        ],
        out_specs=(pl.BlockSpec((1, S, D), lambda b: (b, 0, 0)),
                   pl.BlockSpec((1, H, S, S), lambda b: (b, 0, 0, 0))),
        scratch_shapes=[pltpu.VMEM((S, D), jnp.float32)],
        compiler_params=pltpu.CompilerParams(dimension_semantics=("parallel",)),
        cost_estimate=pl.CostEstimate(flops=flops_attn,
                                      transcendentals=trans_attn,
                                      bytes_accessed=bytes_attn),
    )(query, key, values, mask2d,
      params["wq_t"], params["bq"], params["wk_t"], params["bk"],
      params["wv_t"], params["bv"], params["wo_t"], params["bo"],
      params["neg_gamma"], params["ln1_g"], params["ln1_b"])

    if not apply_pos:
        return x1, attn

    # FFN re-gridded over flattened rows for bigger, more even tiles.
    N = B * S
    TR = _pick_row_tile(N)
    x_flat = x1.reshape(N, D)

    flops_ffn = N * (4 * D * d_ff + 20 * d_ff + 14 * D)
    trans_ffn = N * (d_ff + 1)
    bytes_ffn = 4 * (2 * N * D + 2 * D * d_ff + d_ff + 5 * D)

    out_flat = pl.pallas_call(
        _ffn_block_kernel,
        out_shape=jax.ShapeDtypeStruct((N, D), jnp.float32),
        grid=(N // TR,),
        in_specs=[
            pl.BlockSpec((TR, D), lambda r: (r, 0)),
            pl.BlockSpec((D, d_ff), lambda r: (0, 0)),
            pl.BlockSpec((1, d_ff), lambda r: (0, 0)),
            pl.BlockSpec((d_ff, D), lambda r: (0, 0)),
            pl.BlockSpec((1, D), lambda r: (0, 0)),
            pl.BlockSpec((1, D), lambda r: (0, 0)),
            pl.BlockSpec((1, D), lambda r: (0, 0)),
        ],
        out_specs=pl.BlockSpec((TR, D), lambda r: (r, 0)),
        compiler_params=pltpu.CompilerParams(dimension_semantics=("parallel",)),
        cost_estimate=pl.CostEstimate(flops=flops_ffn,
                                      transcendentals=trans_ffn,
                                      bytes_accessed=bytes_ffn),
    )(x_flat, params["w1_t"], params["b1"], params["w2_t"], params["b2"],
      params["ln2_g"], params["ln2_b"])

    return out_flat.reshape(B, S, D), attn


# ----------------------------------------------------------------------------
# Pure-JAX reference (mirrors the PyTorch forward, eval mode)
# ----------------------------------------------------------------------------
def reference_layer(raw, mask_flag, query, key, values, kq_same, apply_pos=True):
    HP = jax.lax.Precision.HIGHEST
    B, S, D = query.shape
    H = raw["gammas"].shape[0]
    d_k = D // H

    if mask_flag in (0, 1):
        m = (np.triu(np.ones((S, S), dtype=np.float32), k=int(mask_flag)) == 0)
        m = jnp.asarray(m.astype(np.float32))
    else:
        m = jnp.ones((S, S), dtype=jnp.float32)
    mb = m[None, None]                                        # (1,1,S,S)

    def lin(x, w, b):
        return jnp.dot(x, w.T, precision=HP) + b

    def split_heads(x):
        return x.reshape(B, S, H, d_k).transpose(0, 2, 1, 3)

    kq_same_b = (kq_same == 1)
    k_p = split_heads(lin(key, raw["wk"], raw["bk"]))
    if kq_same_b:
        q_p = split_heads(lin(query, raw["wk"], raw["bk"]))
    else:
        q_p = split_heads(lin(query, raw["wq"], raw["bq"]))
    v_p = split_heads(lin(values, raw["wv"], raw["bv"]))

    scores = jnp.einsum("bhqd,bhkd->bhqk", q_p, k_p, precision=HP) / np.float32(np.sqrt(d_k))
    p = jax.nn.softmax(jnp.where(mb > 0, scores, NEG_INF), axis=-1) * mb
    distcum = jnp.cumsum(p, axis=-1)
    disttotal = jnp.sum(p, axis=-1, keepdims=True)
    idx = jnp.arange(S)
    pos = jnp.abs(idx[None, :] - idx[:, None]).astype(jnp.float32)[None, None]
    dist = jnp.sqrt(jnp.maximum((disttotal - distcum) * pos, 0.0))
    g = -jax.nn.softplus(raw["gammas"]).reshape(1, H, 1, 1)
    te = jnp.clip(jnp.exp(dist * g), 1e-5, 1e5)
    attn = jax.nn.softmax(jnp.where(mb > 0, scores * te, NEG_INF), axis=-1)
    out = jnp.einsum("bhqk,bhkd->bhqd", attn, v_p, precision=HP)
    concat = out.transpose(0, 2, 1, 3).reshape(B, S, D)
    o = lin(concat, raw["wo"], raw["bo"])

    x = _layernorm(query + o, raw["ln1_g"], raw["ln1_b"])
    if apply_pos:
        hmid = jax.nn.gelu(lin(x, raw["w1"], raw["b1"]), approximate=False)
        ff = lin(hmid, raw["w2"], raw["b2"])
        x = _layernorm(x + ff, raw["ln2_g"], raw["ln2_b"])
    return x, attn


# ----------------------------------------------------------------------------
# Test harness
# ----------------------------------------------------------------------------
if __name__ == "__main__":
    B, S, D, H, FF = 2, 8, 32, 4, 64
    kq_same = 0          # module converts via (kq_same == 1)
    mask_flag = 1        # causal mask incl. diagonal
    apply_pos = True

    key = jax.random.PRNGKey(0)
    keys = jax.random.split(key, 24)

    def uni(k, shape, scale):
        return ((jax.random.uniform(k, shape, jnp.float32) * 2.0) - 1.0) * scale

    raw = {
        "wq": uni(keys[0], (D, D), 0.3),  "bq": uni(keys[1], (D,), 0.05),
        "wk": uni(keys[2], (D, D), 0.3),  "bk": uni(keys[3], (D,), 0.05),
        "wv": uni(keys[4], (D, D), 0.3),  "bv": uni(keys[5], (D,), 0.05),
        "wo": uni(keys[6], (D, D), 0.3),  "bo": uni(keys[7], (D,), 0.05),
        "gammas": uni(keys[8], (H, 1, 1), 1.0),
        "ln1_g": 1.0 + uni(keys[9], (D,), 0.1),  "ln1_b": uni(keys[10], (D,), 0.1),
        "w1": uni(keys[11], (FF, D), 0.25), "b1": uni(keys[12], (FF,), 0.05),
        "w2": uni(keys[13], (D, FF), 0.25), "b2": uni(keys[14], (D,), 0.05),
        "ln2_g": 1.0 + uni(keys[15], (D,), 0.1), "ln2_b": uni(keys[16], (D,), 0.1),
    }
    query = uni(keys[17], (B, S, D), 0.5)
    key_in = uni(keys[18], (B, S, D), 0.5)
    values = uni(keys[19], (B, S, D), 0.5)

    params = prepare_params(raw, kq_same)
    out, attn = maskt_transformer_layer(params, mask_flag, query, key_in, values,
                                        apply_pos=apply_pos)
    out, attn = jax.block_until_ready((out, attn))

    ref_out, ref_attn = reference_layer(raw, mask_flag, query, key_in, values,
                                        kq_same, apply_pos=apply_pos)

    assert out.shape == (B, S, D)
    assert attn.shape == (B, H, S, S)
    assert jnp.allclose(attn, ref_attn, atol=1e-4, rtol=1e-4), \
        float(jnp.max(jnp.abs(attn - ref_attn)))
    assert jnp.allclose(out, ref_out, atol=1e-4, rtol=1e-4), \
        float(jnp.max(jnp.abs(out - ref_out)))

    print("KERNEL_OK")
</pallas_src>

<mosaic_0001>
module attributes {stable_mosaic.version = 11 : i64} {
  func.func @_attention_block_kernel(%arg0: i32, %arg1: memref<1x8x32xf32, #tpu.memory_space<vmem>>, %arg2: memref<1x8x32xf32, #tpu.memory_space<vmem>>, %arg3: memref<1x8x32xf32, #tpu.memory_space<vmem>>, %arg4: memref<8x8xf32, #tpu.memory_space<vmem>>, %arg5: memref<32x32xf32, #tpu.memory_space<vmem>>, %arg6: memref<1x32xf32, #tpu.memory_space<vmem>>, %arg7: memref<32x32xf32, #tpu.memory_space<vmem>>, %arg8: memref<1x32xf32, #tpu.memory_space<vmem>>, %arg9: memref<32x32xf32, #tpu.memory_space<vmem>>, %arg10: memref<1x32xf32, #tpu.memory_space<vmem>>, %arg11: memref<32x32xf32, #tpu.memory_space<vmem>>, %arg12: memref<1x32xf32, #tpu.memory_space<vmem>>, %arg13: memref<1x4xf32, #tpu.memory_space<vmem>>, %arg14: memref<1x32xf32, #tpu.memory_space<vmem>>, %arg15: memref<1x32xf32, #tpu.memory_space<vmem>>, %arg16: memref<1x8x32xf32, #tpu.memory_space<vmem>>, %arg17: memref<1x4x8x8xf32, #tpu.memory_space<vmem>>, %arg18: memref<8x32xf32, #tpu.memory_space<vmem>>) attributes {dimension_semantics = [#tpu.dimension_semantics<parallel>], iteration_bounds = array<i64: 2>, scalar_prefetch = 0 : i64, scratch_operands = 1 : i64, tpu.core_type = #tpu.core_type<tc>, window_params = [{transform_indices = @transform_0, window_bounds = array<i64: 1, 8, 32>}, {transform_indices = @transform_1, window_bounds = array<i64: 1, 8, 32>}, {transform_indices = @transform_2, window_bounds = array<i64: 1, 8, 32>}, {pipeline_mode = #tpu.pipeline_mode<synchronous>, transform_indices = @transform_3, window_bounds = array<i64: 8, 8>}, {pipeline_mode = #tpu.pipeline_mode<synchronous>, transform_indices = @transform_4, window_bounds = array<i64: 32, 32>}, {pipeline_mode = #tpu.pipeline_mode<synchronous>, transform_indices = @transform_5, window_bounds = array<i64: 1, 32>}, {pipeline_mode = #tpu.pipeline_mode<synchronous>, transform_indices = @transform_6, window_bounds = array<i64: 32, 32>}, {pipeline_mode = #tpu.pipeline_mode<synchronous>, transform_indices = @transform_7, window_bounds = array<i64: 1, 32>}, {pipeline_mode = #tpu.pipeline_mode<synchronous>, transform_indices = @transform_8, window_bounds = array<i64: 32, 32>}, {pipeline_mode = #tpu.pipeline_mode<synchronous>, transform_indices = @transform_9, window_bounds = array<i64: 1, 32>}, {pipeline_mode = #tpu.pipeline_mode<synchronous>, transform_indices = @transform_10, window_bounds = array<i64: 32, 32>}, {pipeline_mode = #tpu.pipeline_mode<synchronous>, transform_indices = @transform_11, window_bounds = array<i64: 1, 32>}, {pipeline_mode = #tpu.pipeline_mode<synchronous>, transform_indices = @transform_12, window_bounds = array<i64: 1, 4>}, {pipeline_mode = #tpu.pipeline_mode<synchronous>, transform_indices = @transform_13, window_bounds = array<i64: 1, 32>}, {pipeline_mode = #tpu.pipeline_mode<synchronous>, transform_indices = @transform_14, window_bounds = array<i64: 1, 32>}, {transform_indices = @transform_15, window_bounds = array<i64: 1, 8, 32>}, {transform_indices = @transform_16, window_bounds = array<i64: 1, 4, 8, 8>}]} {
    %c0 = arith.constant 0 : index
    %c0_0 = arith.constant 0 : index
    %c0_1 = arith.constant 0 : index
    %0 = vector.load %arg1[%c0, %c0_0, %c0_1] : memref<1x8x32xf32, #tpu.memory_space<vmem>>, vector<1x8x32xf32>
    %1 = vector.shape_cast %0 : vector<1x8x32xf32> to vector<8x32xf32>
    %c0_2 = arith.constant 0 : index
    %c0_3 = arith.constant 0 : index
    %c0_4 = arith.constant 0 : index
    %2 = vector.load %arg2[%c0_2, %c0_3, %c0_4] : memref<1x8x32xf32, #tpu.memory_space<vmem>>, vector<1x8x32xf32>
    %3 = vector.shape_cast %2 : vector<1x8x32xf32> to vector<8x32xf32>
    %c0_5 = arith.constant 0 : index
    %c0_6 = arith.constant 0 : index
    %c0_7 = arith.constant 0 : index
    %4 = vector.load %arg3[%c0_5, %c0_6, %c0_7] : memref<1x8x32xf32, #tpu.memory_space<vmem>>, vector<1x8x32xf32>
    %5 = vector.shape_cast %4 : vector<1x8x32xf32> to vector<8x32xf32>
    %c0_8 = arith.constant 0 : index
    %c0_9 = arith.constant 0 : index
    %6 = vector.load %arg5[%c0_8, %c0_9] : memref<32x32xf32, #tpu.memory_space<vmem>>, vector<32x32xf32>
    %cst = arith.constant dense<0.000000e+00> : vector<8x32xf32>
    %7 = tpu.matmul %1, %6, %cst {dimension_numbers = #tpu.dot_dimension_numbers<[1], [0], [0], [1], [0, 0, 1, 1], [], []>} : vector<8x32xf32>, vector<32x32xf32>, vector<8x32xf32> -> vector<8x32xf32>
    %c0_10 = arith.constant 0 : index
    %c0_11 = arith.constant 0 : index
    %8 = vector.load %arg6[%c0_10, %c0_11] : memref<1x32xf32, #tpu.memory_space<vmem>>, vector<1x32xf32>
    %9 = vector.broadcast %8 : vector<1x32xf32> to vector<8x32xf32>
    %10 = arith.addf %7, %9 : vector<8x32xf32>
    %c0_12 = arith.constant 0 : index
    %c0_13 = arith.constant 0 : index
    %11 = vector.load %arg7[%c0_12, %c0_13] : memref<32x32xf32, #tpu.memory_space<vmem>>, vector<32x32xf32>
    %cst_14 = arith.constant dense<0.000000e+00> : vector<8x32xf32>
    %12 = tpu.matmul %3, %11, %cst_14 {dimension_numbers = #tpu.dot_dimension_numbers<[1], [0], [0], [1], [0, 0, 1, 1], [], []>} : vector<8x32xf32>, vector<32x32xf32>, vector<8x32xf32> -> vector<8x32xf32>
    %c0_15 = arith.constant 0 : index
    %c0_16 = arith.constant 0 : index
    %13 = vector.load %arg8[%c0_15, %c0_16] : memref<1x32xf32, #tpu.memory_space<vmem>>, vector<1x32xf32>
    %14 = vector.broadcast %13 : vector<1x32xf32> to vector<8x32xf32>
    %15 = arith.addf %12, %14 : vector<8x32xf32>
    %c0_17 = arith.constant 0 : index
    %c0_18 = arith.constant 0 : index
    %16 = vector.load %arg9[%c0_17, %c0_18] : memref<32x32xf32, #tpu.memory_space<vmem>>, vector<32x32xf32>
    %cst_19 = arith.constant dense<0.000000e+00> : vector<8x32xf32>
    %17 = tpu.matmul %5, %16, %cst_19 {dimension_numbers = #tpu.dot_dimension_numbers<[1], [0], [0], [1], [0, 0, 1, 1], [], []>} : vector<8x32xf32>, vector<32x32xf32>, vector<8x32xf32> -> vector<8x32xf32>
    %c0_20 = arith.constant 0 : index
    %c0_21 = arith.constant 0 : index
    %18 = vector.load %arg10[%c0_20, %c0_21] : memref<1x32xf32, #tpu.memory_space<vmem>>, vector<1x32xf32>
    %19 = vector.broadcast %18 : vector<1x32xf32> to vector<8x32xf32>
    %20 = arith.addf %17, %19 : vector<8x32xf32>
    %c0_22 = arith.constant 0 : index
    %c0_23 = arith.constant 0 : index
    %21 = vector.load %arg4[%c0_22, %c0_23] : memref<8x8xf32, #tpu.memory_space<vmem>>, vector<8x8xf32>
    %cst_24 = arith.constant 5.000000e-01 : f32
    %22 = vector.broadcast %cst_24 : f32 to vector<8x8xf32>
    %23 = arith.cmpf ogt, %21, %22 : vector<8x8xf32>
    %24 = tpu.iota {dimensions = array<i32: 0>} : vector<8x8xi32>
    %25 = tpu.iota {dimensions = array<i32: 1>} : vector<8x8xi32>
    %26 = arith.subi %25, %24 : vector<8x8xi32>
    %27 = arith.sitofp %26 : vector<8x8xi32> to vector<8x8xf32>
    %28 = math.absf %27 : vector<8x8xf32>
    %29 = arith.cmpi sgt, %24, %25 : vector<8x8xi32>
    %30 = arith.extui %29 : vector<8x8xi1> to vector<8x8xi32>
    %31 = arith.sitofp %30 : vector<8x8xi32> to vector<8x8xf32>
    %32 = vector.extract_strided_slice %10 {offsets = [0, 0], sizes = [8, 8], strides = [1, 1]} : vector<8x32xf32> to vector<8x8xf32>
    %33 = vector.extract_strided_slice %15 {offsets = [0, 0], sizes = [8, 8], strides = [1, 1]} : vector<8x32xf32> to vector<8x8xf32>
    %34 = vector.extract_strided_slice %20 {offsets = [0, 0], sizes = [8, 8], strides = [1, 1]} : vector<8x32xf32> to vector<8x8xf32>
    %cst_25 = arith.constant dense<0.000000e+00> : vector<8x8xf32>
    %35 = tpu.matmul %32, %33, %cst_25 {dimension_numbers = #tpu.dot_dimension_numbers<[1], [1], [0], [0], [0, 0, 1, 0], [], []>} : vector<8x8xf32>, vector<8x8xf32>, vector<8x8xf32> -> vector<8x8xf32>
    %cst_26 = arith.constant 2.82842708 : f32
    %36 = vector.broadcast %cst_26 : f32 to vector<8x8xf32>
    %37 = arith.divf %35, %36 : vector<8x8xf32>
    %cst_27 = arith.constant -1.000000e+32 : f32
    %38 = vector.broadcast %cst_27 : f32 to vector<8x8xf32>
    %39 = arith.select %23, %37, %38 : vector<8x8xi1>, vector<8x8xf32>
    %cst_28 = arith.constant dense<0xFF800000> : vector<8xf32>
    %40 = vector.multi_reduction <maximumf>, %39, %cst_28 [1] : vector<8x8xf32> to vector<8xf32>
    %41 = vector.shape_cast %40 : vector<8xf32> to vector<8x1xf32>
    %42 = vector.broadcast %41 : vector<8x1xf32> to vector<8x8xf32>
    %43 = arith.subf %39, %42 : vector<8x8xf32>
    %44 = math.exp %43 : vector<8x8xf32>
    %cst_29 = arith.constant dense<0.000000e+00> : vector<8xf32>
    %45 = vector.multi_reduction <add>, %44, %cst_29 [1] : vector<8x8xf32> to vector<8xf32>
    %46 = vector.shape_cast %45 : vector<8xf32> to vector<8x1xf32>
    %47 = vector.broadcast %46 : vector<8x1xf32> to vector<8x8xf32>
    %48 = arith.divf %44, %47 : vector<8x8xf32>
    %49 = arith.mulf %48, %21 : vector<8x8xf32>
    %cst_30 = arith.constant dense<0.000000e+00> : vector<8x8xf32>
    %50 = tpu.matmul %49, %31, %cst_30 {dimension_numbers = #tpu.dot_dimension_numbers<[1], [0], [0], [1], [0, 0, 1, 1], [], []>} : vector<8x8xf32>, vector<8x8xf32>, vector<8x8xf32> -> vector<8x8xf32>
    %51 = arith.mulf %50, %28 : vector<8x8xf32>
    %cst_31 = arith.constant 0.000000e+00 : f32
    %52 = vector.broadcast %cst_31 : f32 to vector<8x8xf32>
    %53 = arith.maximumf %51, %52 : vector<8x8xf32>
    %54 = math.sqrt %53 : vector<8x8xf32>
    %c0_32 = arith.constant 0 : index
    %c0_33 = arith.constant 0 : index
    %55 = vector.load %arg13[%c0_32, %c0_33] : memref<1x4xf32, #tpu.memory_space<vmem>>, vector<1x1xf32>
    %56 = vector.broadcast %55 : vector<1x1xf32> to vector<8x8xf32>
    %57 = arith.mulf %54, %56 : vector<8x8xf32>
    %58 = math.exp %57 : vector<8x8xf32>
    %cst_34 = arith.constant 9.99999974E-6 : f32
    %cst_35 = arith.constant 1.000000e+05 : f32
    %59 = vector.broadcast %cst_34 : f32 to vector<8x8xf32>
    %60 = arith.maximumf %59, %58 : vector<8x8xf32>
    %61 = vector.broadcast %cst_35 : f32 to vector<8x8xf32>
    %62 = arith.minimumf %61, %60 : vector<8x8xf32>
    %63 = arith.mulf %37, %62 : vector<8x8xf32>
    %cst_36 = arith.constant -1.000000e+32 : f32
    %64 = vector.broadcast %cst_36 : f32 to vector<8x8xf32>
    %65 = arith.select %23, %63, %64 : vector<8x8xi1>, vector<8x8xf32>
    %cst_37 = arith.constant dense<0xFF800000> : vector<8xf32>
    %66 = vector.multi_reduction <maximumf>, %65, %cst_37 [1] : vector<8x8xf32> to vector<8xf32>
    %67 = vector.shape_cast %66 : vector<8xf32> to vector<8x1xf32>
    %68 = vector.broadcast %67 : vector<8x1xf32> to vector<8x8xf32>
    %69 = arith.subf %65, %68 : vector<8x8xf32>
    %70 = math.exp %69 : vector<8x8xf32>
    %cst_38 = arith.constant dense<0.000000e+00> : vector<8xf32>
    %71 = vector.multi_reduction <add>, %70, %cst_38 [1] : vector<8x8xf32> to vector<8xf32>
    %72 = vector.shape_cast %71 : vector<8xf32> to vector<8x1xf32>
    %73 = vector.broadcast %72 : vector<8x1xf32> to vector<8x8xf32>
    %74 = arith.divf %70, %73 : vector<8x8xf32>
    %c0_39 = arith.constant 0 : index
    %c0_40 = arith.constant 0 : index
    %c0_41 = arith.constant 0 : index
    %c0_42 = arith.constant 0 : index
    %75 = vector.load %arg17[%c0_39, %c0_40, %c0_41, %c0_42] : memref<1x4x8x8xf32, #tpu.memory_space<vmem>>, vector<1x1x8x8xf32>
    %76 = vector.shape_cast %75 : vector<1x1x8x8xf32> to vector<8x8xf32>
    %77 = vector.shape_cast %74 : vector<8x8xf32> to vector<1x1x8x8xf32>
    tpu.vector_store %arg17[%c0_39, %c0_40, %c0_41, %c0_42], %77 {strides = array<i32>} : memref<1x4x8x8xf32, #tpu.memory_space<vmem>>, vector<1x1x8x8xf32>,
    %cst_43 = arith.constant dense<0.000000e+00> : vector<8x8xf32>
    %78 = tpu.matmul %74, %34, %cst_43 {dimension_numbers = #tpu.dot_dimension_numbers<[1], [0], [0], [1], [0, 0, 1, 1], [], []>} : vector<8x8xf32>, vector<8x8xf32>, vector<8x8xf32> -> vector<8x8xf32>
    %c0_44 = arith.constant 0 : index
    %c0_45 = arith.constant 0 : index
    %79 = vector.load %arg18[%c0_44, %c0_45] : memref<8x32xf32, #tpu.memory_space<vmem>>, vector<8x8xf32>
    tpu.vector_store %arg18[%c0_44, %c0_45], %78 {strides = array<i32>} : memref<8x32xf32, #tpu.memory_space<vmem>>, vector<8x8xf32>,
    %80 = vector.extract_strided_slice %10 {offsets = [0, 8], sizes = [8, 8], strides = [1, 1]} : vector<8x32xf32> to vector<8x8xf32>
    %81 = vector.extract_strided_slice %15 {offsets = [0, 8], sizes = [8, 8], strides = [1, 1]} : vector<8x32xf32> to vector<8x8xf32>
    %82 = vector.extract_strided_slice %20 {offsets = [0, 8], sizes = [8, 8], strides = [1, 1]} : vector<8x32xf32> to vector<8x8xf32>
    %cst_46 = arith.constant dense<0.000000e+00> : vector<8x8xf32>
    %83 = tpu.matmul %80, %81, %cst_46 {dimension_numbers = #tpu.dot_dimension_numbers<[1], [1], [0], [0], [0, 0, 1, 0], [], []>} : vector<8x8xf32>, vector<8x8xf32>, vector<8x8xf32> -> vector<8x8xf32>
    %cst_47 = arith.constant 2.82842708 : f32
    %84 = vector.broadcast %cst_47 : f32 to vector<8x8xf32>
    %85 = arith.divf %83, %84 : vector<8x8xf32>
    %cst_48 = arith.constant -1.000000e+32 : f32
    %86 = vector.broadcast %cst_48 : f32 to vector<8x8xf32>
    %87 = arith.select %23, %85, %86 : vector<8x8xi1>, vector<8x8xf32>
    %cst_49 = arith.constant dense<0xFF800000> : vector<8xf32>
    %88 = vector.multi_reduction <maximumf>, %87, %cst_49 [1] : vector<8x8xf32> to vector<8xf32>
    %89 = vector.shape_cast %88 : vector<8xf32> to vector<8x1xf32>
    %90 = vector.broadcast %89 : vector<8x1xf32> to vector<8x8xf32>
    %91 = arith.subf %87, %90 : vector<8x8xf32>
    %92 = math.exp %91 : vector<8x8xf32>
    %cst_50 = arith.constant dense<0.000000e+00> : vector<8xf32>
    %93 = vector.multi_reduction <add>, %92, %cst_50 [1] : vector<8x8xf32> to vector<8xf32>
    %94 = vector.shape_cast %93 : vector<8xf32> to vector<8x1xf32>
    %95 = vector.broadcast %94 : vector<8x1xf32> to vector<8x8xf32>
    %96 = arith.divf %92, %95 : vector<8x8xf32>
    %97 = arith.mulf %96, %21 : vector<8x8xf32>
    %cst_51 = arith.constant dense<0.000000e+00> : vector<8x8xf32>
    %98 = tpu.matmul %97, %31, %cst_51 {dimension_numbers = #tpu.dot_dimension_numbers<[1], [0], [0], [1], [0, 0, 1, 1], [], []>} : vector<8x8xf32>, vector<8x8xf32>, vector<8x8xf32> -> vector<8x8xf32>
    %99 = arith.mulf %98, %28 : vector<8x8xf32>
    %cst_52 = arith.constant 0.000000e+00 : f32
    %100 = vector.broadcast %cst_52 : f32 to vector<8x8xf32>
    %101 = arith.maximumf %99, %100 : vector<8x8xf32>
    %102 = math.sqrt %101 : vector<8x8xf32>
    %c0_53 = arith.constant 0 : index
    %c1 = arith.constant 1 : index
    %103 = vector.load %arg13[%c0_53, %c1] : memref<1x4xf32, #tpu.memory_space<vmem>>, vector<1x1xf32>
    %104 = vector.broadcast %103 : vector<1x1xf32> to vector<8x8xf32>
    %105 = arith.mulf %102, %104 : vector<8x8xf32>
    %106 = math.exp %105 : vector<8x8xf32>
    %cst_54 = arith.constant 9.99999974E-6 : f32
    %cst_55 = arith.constant 1.000000e+05 : f32
    %107 = vector.broadcast %cst_54 : f32 to vector<8x8xf32>
    %108 = arith.maximumf %107, %106 : vector<8x8xf32>
    %109 = vector.broadcast %cst_55 : f32 to vector<8x8xf32>
    %110 = arith.minimumf %109, %108 : vector<8x8xf32>
    %111 = arith.mulf %85, %110 : vector<8x8xf32>
    %cst_56 = arith.constant -1.000000e+32 : f32
    %112 = vector.broadcast %cst_56 : f32 to vector<8x8xf32>
    %113 = arith.select %23, %111, %112 : vector<8x8xi1>, vector<8x8xf32>
    %cst_57 = arith.constant dense<0xFF800000> : vector<8xf32>
    %114 = vector.multi_reduction <maximumf>, %113, %cst_57 [1] : vector<8x8xf32> to vector<8xf32>
    %115 = vector.shape_cast %114 : vector<8xf32> to vector<8x1xf32>
    %116 = vector.broadcast %115 : vector<8x1xf32> to vector<8x8xf32>
    %117 = arith.subf %113, %116 : vector<8x8xf32>
    %118 = math.exp %117 : vector<8x8xf32>
    %cst_58 = arith.constant dense<0.000000e+00> : vector<8xf32>
    %119 = vector.multi_reduction <add>, %118, %cst_58 [1] : vector<8x8xf32> to vector<8xf32>
    %120 = vector.shape_cast %119 : vector<8xf32> to vector<8x1xf32>
    %121 = vector.broadcast %120 : vector<8x1xf32> to vector<8x8xf32>
    %122 = arith.divf %118, %121 : vector<8x8xf32>
    %c0_59 = arith.constant 0 : index
    %c1_60 = arith.constant 1 : index
    %c0_61 = arith.constant 0 : index
    %c0_62 = arith.constant 0 : index
    %123 = vector.load %arg17[%c0_59, %c1_60, %c0_61, %c0_62] : memref<1x4x8x8xf32, #tpu.memory_space<vmem>>, vector<1x1x8x8xf32>
    %124 = vector.shape_cast %123 : vector<1x1x8x8xf32> to vector<8x8xf32>
    %125 = vector.shape_cast %122 : vector<8x8xf32> to vector<1x1x8x8xf32>
    tpu.vector_store %arg17[%c0_59, %c1_60, %c0_61, %c0_62], %125 {strides = array<i32>} : memref<1x4x8x8xf32, #tpu.memory_space<vmem>>, vector<1x1x8x8xf32>,
    %cst_63 = arith.constant dense<0.000000e+00> : vector<8x8xf32>
    %126 = tpu.matmul %122, %82, %cst_63 {dimension_numbers = #tpu.dot_dimension_numbers<[1], [0], [0], [1], [0, 0, 1, 1], [], []>} : vector<8x8xf32>, vector<8x8xf32>, vector<8x8xf32> -> vector<8x8xf32>
    %c0_64 = arith.constant 0 : index
    %c8 = arith.constant 8 : index
    %127 = vector.load %arg18[%c0_64, %c8] : memref<8x32xf32, #tpu.memory_space<vmem>>, vector<8x8xf32>
    tpu.vector_store %arg18[%c0_64, %c8], %126 {strides = array<i32>} : memref<8x32xf32, #tpu.memory_space<vmem>>, vector<8x8xf32>,
    %128 = vector.extract_strided_slice %10 {offsets = [0, 16], sizes = [8, 8], strides = [1, 1]} : vector<8x32xf32> to vector<8x8xf32>
    %129 = vector.extract_strided_slice %15 {offsets = [0, 16], sizes = [8, 8], strides = [1, 1]} : vector<8x32xf32> to vector<8x8xf32>
    %130 = vector.extract_strided_slice %20 {offsets = [0, 16], sizes = [8, 8], strides = [1, 1]} : vector<8x32xf32> to vector<8x8xf32>
    %cst_65 = arith.constant dense<0.000000e+00> : vector<8x8xf32>
    %131 = tpu.matmul %128, %129, %cst_65 {dimension_numbers = #tpu.dot_dimension_numbers<[1], [1], [0], [0], [0, 0, 1, 0], [], []>} : vector<8x8xf32>, vector<8x8xf32>, vector<8x8xf32> -> vector<8x8xf32>
    %cst_66 = arith.constant 2.82842708 : f32
    %132 = vector.broadcast %cst_66 : f32 to vector<8x8xf32>
    %133 = arith.divf %131, %132 : vector<8x8xf32>
    %cst_67 = arith.constant -1.000000e+32 : f32
    %134 = vector.broadcast %cst_67 : f32 to vector<8x8xf32>
    %135 = arith.select %23, %133, %134 : vector<8x8xi1>, vector<8x8xf32>
    %cst_68 = arith.constant dense<0xFF800000> : vector<8xf32>
    %136 = vector.multi_reduction <maximumf>, %135, %cst_68 [1] : vector<8x8xf32> to vector<8xf32>
    %137 = vector.shape_cast %136 : vector<8xf32> to vector<8x1xf32>
    %138 = vector.broadcast %137 : vector<8x1xf32> to vector<8x8xf32>
    %139 = arith.subf %135, %138 : vector<8x8xf32>
    %140 = math.exp %139 : vector<8x8xf32>
    %cst_69 = arith.constant dense<0.000000e+00> : vector<8xf32>
    %141 = vector.multi_reduction <add>, %140, %cst_69 [1] : vector<8x8xf32> to vector<8xf32>
    %142 = vector.shape_cast %141 : vector<8xf32> to vector<8x1xf32>
    %143 = vector.broadcast %142 : vector<8x1xf32> to vector<8x8xf32>
    %144 = arith.divf %140, %143 : vector<8x8xf32>
    %145 = arith.mulf %144, %21 : vector<8x8xf32>
    %cst_70 = arith.constant dense<0.000000e+00> : vector<8x8xf32>
    %146 = tpu.matmul %145, %31, %cst_70 {dimension_numbers = #tpu.dot_dimension_numbers<[1], [0], [0], [1], [0, 0, 1, 1], [], []>} : vector<8x8xf32>, vector<8x8xf32>, vector<8x8xf32> -> vector<8x8xf32>
    %147 = arith.mulf %146, %28 : vector<8x8xf32>
    %cst_71 = arith.constant 0.000000e+00 : f32
    %148 = vector.broadcast %cst_71 : f32 to vector<8x8xf32>
    %149 = arith.maximumf %147, %148 : vector<8x8xf32>
    %150 = math.sqrt %149 : vector<8x8xf32>
    %c0_72 = arith.constant 0 : index
    %c2 = arith.constant 2 : index
    %151 = vector.load %arg13[%c0_72, %c2] : memref<1x4xf32, #tpu.memory_space<vmem>>, vector<1x1xf32>
    %152 = vector.broadcast %151 : vector<1x1xf32> to vector<8x8xf32>
    %153 = arith.mulf %150, %152 : vector<8x8xf32>
    %154 = math.exp %153 : vector<8x8xf32>
    %cst_73 = arith.constant 9.99999974E-6 : f32
    %cst_74 = arith.constant 1.000000e+05 : f32
    %155 = vector.broadcast %cst_73 : f32 to vector<8x8xf32>
    %156 = arith.maximumf %155, %154 : vector<8x8xf32>
    %157 = vector.broadcast %cst_74 : f32 to vector<8x8xf32>
    %158 = arith.minimumf %157, %156 : vector<8x8xf32>
    %159 = arith.mulf %133, %158 : vector<8x8xf32>
    %cst_75 = arith.constant -1.000000e+32 : f32
    %160 = vector.broadcast %cst_75 : f32 to vector<8x8xf32>
    %161 = arith.select %23, %159, %160 : vector<8x8xi1>, vector<8x8xf32>
    %cst_76 = arith.constant dense<0xFF800000> : vector<8xf32>
    %162 = vector.multi_reduction <maximumf>, %161, %cst_76 [1] : vector<8x8xf32> to vector<8xf32>
    %163 = vector.shape_cast %162 : vector<8xf32> to vector<8x1xf32>
    %164 = vector.broadcast %163 : vector<8x1xf32> to vector<8x8xf32>
    %165 = arith.subf %161, %164 : vector<8x8xf32>
    %166 = math.exp %165 : vector<8x8xf32>
    %cst_77 = arith.constant dense<0.000000e+00> : vector<8xf32>
    %167 = vector.multi_reduction <add>, %166, %cst_77 [1] : vector<8x8xf32> to vector<8xf32>
    %168 = vector.shape_cast %167 : vector<8xf32> to vector<8x1xf32>
    %169 = vector.broadcast %168 : vector<8x1xf32> to vector<8x8xf32>
    %170 = arith.divf %166, %169 : vector<8x8xf32>
    %c0_78 = arith.constant 0 : index
    %c2_79 = arith.constant 2 : index
    %c0_80 = arith.constant 0 : index
    %c0_81 = arith.constant 0 : index
    %171 = vector.load %arg17[%c0_78, %c2_79, %c0_80, %c0_81] : memref<1x4x8x8xf32, #tpu.memory_space<vmem>>, vector<1x1x8x8xf32>
    %172 = vector.shape_cast %171 : vector<1x1x8x8xf32> to vector<8x8xf32>
    %173 = vector.shape_cast %170 : vector<8x8xf32> to vector<1x1x8x8xf32>
    tpu.vector_store %arg17[%c0_78, %c2_79, %c0_80, %c0_81], %173 {strides = array<i32>} : memref<1x4x8x8xf32, #tpu.memory_space<vmem>>, vector<1x1x8x8xf32>,
    %cst_82 = arith.constant dense<0.000000e+00> : vector<8x8xf32>
    %174 = tpu.matmul %170, %130, %cst_82 {dimension_numbers = #tpu.dot_dimension_numbers<[1], [0], [0], [1], [0, 0, 1, 1], [], []>} : vector<8x8xf32>, vector<8x8xf32>, vector<8x8xf32> -> vector<8x8xf32>
    %c0_83 = arith.constant 0 : index
    %c16 = arith.constant 16 : index
    %175 = vector.load %arg18[%c0_83, %c16] : memref<8x32xf32, #tpu.memory_space<vmem>>, vector<8x8xf32>
    tpu.vector_store %arg18[%c0_83, %c16], %174 {strides = array<i32>} : memref<8x32xf32, #tpu.memory_space<vmem>>, vector<8x8xf32>,
    %176 = vector.extract_strided_slice %10 {offsets = [0, 24], sizes = [8, 8], strides = [1, 1]} : vector<8x32xf32> to vector<8x8xf32>
    %177 = vector.extract_strided_slice %15 {offsets = [0, 24], sizes = [8, 8], strides = [1, 1]} : vector<8x32xf32> to vector<8x8xf32>
    %178 = vector.extract_strided_slice %20 {offsets = [0, 24], sizes = [8, 8], strides = [1, 1]} : vector<8x32xf32> to vector<8x8xf32>
    %cst_84 = arith.constant dense<0.000000e+00> : vector<8x8xf32>
    %179 = tpu.matmul %176, %177, %cst_84 {dimension_numbers = #tpu.dot_dimension_numbers<[1], [1], [0], [0], [0, 0, 1, 0], [], []>} : vector<8x8xf32>, vector<8x8xf32>, vector<8x8xf32> -> vector<8x8xf32>
    %cst_85 = arith.constant 2.82842708 : f32
    %180 = vector.broadcast %cst_85 : f32 to vector<8x8xf32>
    %181 = arith.divf %179, %180 : vector<8x8xf32>
    %cst_86 = arith.constant -1.000000e+32 : f32
    %182 = vector.broadcast %cst_86 : f32 to vector<8x8xf32>
    %183 = arith.select %23, %181, %182 : vector<8x8xi1>, vector<8x8xf32>
    %cst_87 = arith.constant dense<0xFF800000> : vector<8xf32>
    %184 = vector.multi_reduction <maximumf>, %183, %cst_87 [1] : vector<8x8xf32> to vector<8xf32>
    %185 = vector.shape_cast %184 : vector<8xf32> to vector<8x1xf32>
    %186 = vector.broadcast %185 : vector<8x1xf32> to vector<8x8xf32>
    %187 = arith.subf %183, %186 : vector<8x8xf32>
    %188 = math.exp %187 : vector<8x8xf32>
    %cst_88 = arith.constant dense<0.000000e+00> : vector<8xf32>
    %189 = vector.multi_reduction <add>, %188, %cst_88 [1] : vector<8x8xf32> to vector<8xf32>
    %190 = vector.shape_cast %189 : vector<8xf32> to vector<8x1xf32>
    %191 = vector.broadcast %190 : vector<8x1xf32> to vector<8x8xf32>
    %192 = arith.divf %188, %191 : vector<8x8xf32>
    %193 = arith.mulf %192, %21 : vector<8x8xf32>
    %cst_89 = arith.constant dense<0.000000e+00> : vector<8x8xf32>
    %194 = tpu.matmul %193, %31, %cst_89 {dimension_numbers = #tpu.dot_dimension_numbers<[1], [0], [0], [1], [0, 0, 1, 1], [], []>} : vector<8x8xf32>, vector<8x8xf32>, vector<8x8xf32> -> vector<8x8xf32>
    %195 = arith.mulf %194, %28 : vector<8x8xf32>
    %cst_90 = arith.constant 0.000000e+00 : f32
    %196 = vector.broadcast %cst_90 : f32 to vector<8x8xf32>
    %197 = arith.maximumf %195, %196 : vector<8x8xf32>
    %198 = math.sqrt %197 : vector<8x8xf32>
    %c0_91 = arith.constant 0 : index
    %c3 = arith.constant 3 : index
    %199 = vector.load %arg13[%c0_91, %c3] : memref<1x4xf32, #tpu.memory_space<vmem>>, vector<1x1xf32>
    %200 = vector.broadcast %199 : vector<1x1xf32> to vector<8x8xf32>
    %201 = arith.mulf %198, %200 : vector<8x8xf32>
    %202 = math.exp %201 : vector<8x8xf32>
    %cst_92 = arith.constant 9.99999974E-6 : f32
    %cst_93 = arith.constant 1.000000e+05 : f32
    %203 = vector.broadcast %cst_92 : f32 to vector<8x8xf32>
    %204 = arith.maximumf %203, %202 : vector<8x8xf32>
    %205 = vector.broadcast %cst_93 : f32 to vector<8x8xf32>
    %206 = arith.minimumf %205, %204 : vector<8x8xf32>
    %207 = arith.mulf %181, %206 : vector<8x8xf32>
    %cst_94 = arith.constant -1.000000e+32 : f32
    %208 = vector.broadcast %cst_94 : f32 to vector<8x8xf32>
    %209 = arith.select %23, %207, %208 : vector<8x8xi1>, vector<8x8xf32>
    %cst_95 = arith.constant dense<0xFF800000> : vector<8xf32>
    %210 = vector.multi_reduction <maximumf>, %209, %cst_95 [1] : vector<8x8xf32> to vector<8xf32>
    %211 = vector.shape_cast %210 : vector<8xf32> to vector<8x1xf32>
    %212 = vector.broadcast %211 : vector<8x1xf32> to vector<8x8xf32>
    %213 = arith.subf %209, %212 : vector<8x8xf32>
    %214 = math.exp %213 : vector<8x8xf32>
    %cst_96 = arith.constant dense<0.000000e+00> : vector<8xf32>
    %215 = vector.multi_reduction <add>, %214, %cst_96 [1] : vector<8x8xf32> to vector<8xf32>
    %216 = vector.shape_cast %215 : vector<8xf32> to vector<8x1xf32>
    %217 = vector.broadcast %216 : vector<8x1xf32> to vector<8x8xf32>
    %218 = arith.divf %214, %217 : vector<8x8xf32>
    %c0_97 = arith.constant 0 : index
    %c3_98 = arith.constant 3 : index
    %c0_99 = arith.constant 0 : index
    %c0_100 = arith.constant 0 : index
    %219 = vector.load %arg17[%c0_97, %c3_98, %c0_99, %c0_100] : memref<1x4x8x8xf32, #tpu.memory_space<vmem>>, vector<1x1x8x8xf32>
    %220 = vector.shape_cast %219 : vector<1x1x8x8xf32> to vector<8x8xf32>
    %221 = vector.shape_cast %218 : vector<8x8xf32> to vector<1x1x8x8xf32>
    tpu.vector_store %arg17[%c0_97, %c3_98, %c0_99, %c0_100], %221 {strides = array<i32>} : memref<1x4x8x8xf32, #tpu.memory_space<vmem>>, vector<1x1x8x8xf32>,
    %cst_101 = arith.constant dense<0.000000e+00> : vector<8x8xf32>
    %222 = tpu.matmul %218, %178, %cst_101 {dimension_numbers = #tpu.dot_dimension_numbers<[1], [0], [0], [1], [0, 0, 1, 1], [], []>} : vector<8x8xf32>, vector<8x8xf32>, vector<8x8xf32> -> vector<8x8xf32>
    %c0_102 = arith.constant 0 : index
    %c24 = arith.constant 24 : index
    %223 = vector.load %arg18[%c0_102, %c24] : memref<8x32xf32, #tpu.memory_space<vmem>>, vector<8x8xf32>
    tpu.vector_store %arg18[%c0_102, %c24], %222 {strides = array<i32>} : memref<8x32xf32, #tpu.memory_space<vmem>>, vector<8x8xf32>,
    %c0_103 = arith.constant 0 : index
    %c0_104 = arith.constant 0 : index
    %224 = vector.load %arg18[%c0_103, %c0_104] : memref<8x32xf32, #tpu.memory_space<vmem>>, vector<8x32xf32>
    %c0_105 = arith.constant 0 : index
    %c0_106 = arith.constant 0 : index
    %225 = vector.load %arg11[%c0_105, %c0_106] : memref<32x32xf32, #tpu.memory_space<vmem>>, vector<32x32xf32>
    %cst_107 = arith.constant dense<0.000000e+00> : vector<8x32xf32>
    %226 = tpu.matmul %224, %225, %cst_107 {dimension_numbers = #tpu.dot_dimension_numbers<[1], [0], [0], [1], [0, 0, 1, 1], [], []>} : vector<8x32xf32>, vector<32x32xf32>, vector<8x32xf32> -> vector<8x32xf32>
    %c0_108 = arith.constant 0 : index
    %c0_109 = arith.constant 0 : index
    %227 = vector.load %arg12[%c0_108, %c0_109] : memref<1x32xf32, #tpu.memory_space<vmem>>, vector<1x32xf32>
    %228 = vector.broadcast %227 : vector<1x32xf32> to vector<8x32xf32>
    %229 = arith.addf %226, %228 : vector<8x32xf32>
    %230 = arith.addf %1, %229 : vector<8x32xf32>
    %c0_110 = arith.constant 0 : index
    %c0_111 = arith.constant 0 : index
    %231 = vector.load %arg14[%c0_110, %c0_111] : memref<1x32xf32, #tpu.memory_space<vmem>>, vector<1x32xf32>
    %c0_112 = arith.constant 0 : index
    %c0_113 = arith.constant 0 : index
    %232 = vector.load %arg15[%c0_112, %c0_113] : memref<1x32xf32, #tpu.memory_space<vmem>>, vector<1x32xf32>
    %cst_114 = arith.constant dense<0.000000e+00> : vector<8xf32>
    %233 = vector.multi_reduction <add>, %230, %cst_114 [1] : vector<8x32xf32> to vector<8xf32>
    %234 = vector.shape_cast %233 : vector<8xf32> to vector<8x1xf32>
    %cst_115 = arith.constant 3.200000e+01 : f32
    %235 = vector.broadcast %cst_115 : f32 to vector<8x1xf32>
    %236 = arith.divf %234, %235 : vector<8x1xf32>
    %237 = vector.broadcast %236 : vector<8x1xf32> to vector<8x32xf32>
    %238 = arith.subf %230, %237 : vector<8x32xf32>
    %239 = arith.mulf %238, %238 : vector<8x32xf32>
    %cst_116 = arith.constant dense<0.000000e+00> : vector<8xf32>
    %240 = vector.multi_reduction <add>, %239, %cst_116 [1] : vector<8x32xf32> to vector<8xf32>
    %241 = vector.shape_cast %240 : vector<8xf32> to vector<8x1xf32>
    %cst_117 = arith.constant 3.200000e+01 : f32
    %242 = vector.broadcast %cst_117 : f32 to vector<8x1xf32>
    %243 = arith.divf %241, %242 : vector<8x1xf32>
    %cst_118 = arith.constant 9.99999974E-6 : f32
    %244 = vector.broadcast %cst_118 : f32 to vector<8x1xf32>
    %245 = arith.addf %243, %244 : vector<8x1xf32>
    %246 = math.rsqrt %245 : vector<8x1xf32>
    %247 = vector.broadcast %246 : vector<8x1xf32> to vector<8x32xf32>
    %248 = arith.mulf %238, %247 : vector<8x32xf32>
    %249 = vector.broadcast %231 : vector<1x32xf32> to vector<8x32xf32>
    %250 = arith.mulf %248, %249 : vector<8x32xf32>
    %251 = vector.broadcast %232 : vector<1x32xf32> to vector<8x32xf32>
    %252 = arith.addf %250, %251 : vector<8x32xf32>
    %c0_119 = arith.constant 0 : index
    %c0_120 = arith.constant 0 : index
    %c0_121 = arith.constant 0 : index
    %253 = vector.load %arg16[%c0_119, %c0_120, %c0_121] : memref<1x8x32xf32, #tpu.memory_space<vmem>>, vector<1x8x32xf32>
    %254 = vector.shape_cast %253 : vector<1x8x32xf32> to vector<8x32xf32>
    %255 = vector.shape_cast %252 : vector<8x32xf32> to vector<1x8x32xf32>
    tpu.vector_store %arg16[%c0_119, %c0_120, %c0_121], %255 {strides = array<i32>} : memref<1x8x32xf32, #tpu.memory_space<vmem>>, vector<1x8x32xf32>,
    return
  }
  func.func @transform_0(%arg0: i32) -> (i32, i32, i32) {
    %c0_i32 = arith.constant 0 : i32
    %c0_i32_0 = arith.constant 0 : i32
    %c0_i32_1 = arith.constant 0 : i32
    return %arg0, %c0_i32, %c0_i32_0 : i32, i32, i32
  }
  func.func @transform_1(%arg0: i32) -> (i32, i32, i32) {
    %c0_i32 = arith.constant 0 : i32
    %c0_i32_0 = arith.constant 0 : i32
    %c0_i32_1 = arith.constant 0 : i32
    return %arg0, %c0_i32, %c0_i32_0 : i32, i32, i32
  }
  func.func @transform_2(%arg0: i32) -> (i32, i32, i32) {
    %c0_i32 = arith.constant 0 : i32
    %c0_i32_0 = arith.constant 0 : i32
    %c0_i32_1 = arith.constant 0 : i32
    return %arg0, %c0_i32, %c0_i32_0 : i32, i32, i32
  }
  func.func @transform_3(%arg0: i32) -> (i32, i32) {
    %c0_i32 = arith.constant 0 : i32
    %c0_i32_0 = arith.constant 0 : i32
    %c0_i32_1 = arith.constant 0 : i32
    return %c0_i32, %c0_i32_0 : i32, i32
  }
  func.func @transform_4(%arg0: i32) -> (i32, i32) {
    %c0_i32 = arith.constant 0 : i32
    %c0_i32_0 = arith.constant 0 : i32
    %c0_i32_1 = arith.constant 0 : i32
    return %c0_i32, %c0_i32_0 : i32, i32
  }
  func.func @transform_5(%arg0: i32) -> (i32, i32) {
    %c0_i32 = arith.constant 0 : i32
    %c0_i32_0 = arith.constant 0 : i32
    %c0_i32_1 = arith.constant 0 : i32
    return %c0_i32, %c0_i32_0 : i32, i32
  }
  func.func @transform_6(%arg0: i32) -> (i32, i32) {
    %c0_i32 = arith.constant 0 : i32
    %c0_i32_0 = arith.constant 0 : i32
    %c0_i32_1 = arith.constant 0 : i32
    return %c0_i32, %c0_i32_0 : i32, i32
  }
  func.func @transform_7(%arg0: i32) -> (i32, i32) {
    %c0_i32 = arith.constant 0 : i32
    %c0_i32_0 = arith.constant 0 : i32
    %c0_i32_1 = arith.constant 0 : i32
    return %c0_i32, %c0_i32_0 : i32, i32
  }
  func.func @transform_8(%arg0: i32) -> (i32, i32) {
    %c0_i32 = arith.constant 0 : i32
    %c0_i32_0 = arith.constant 0 : i32
    %c0_i32_1 = arith.constant 0 : i32
    return %c0_i32, %c0_i32_0 : i32, i32
  }
  func.func @transform_9(%arg0: i32) -> (i32, i32) {
    %c0_i32 = arith.constant 0 : i32
    %c0_i32_0 = arith.constant 0 : i32
    %c0_i32_1 = arith.constant 0 : i32
    return %c0_i32, %c0_i32_0 : i32, i32
  }
  func.func @transform_10(%arg0: i32) -> (i32, i32) {
    %c0_i32 = arith.constant 0 : i32
    %c0_i32_0 = arith.constant 0 : i32
    %c0_i32_1 = arith.constant 0 : i32
    return %c0_i32, %c0_i32_0 : i32, i32
  }
  func.func @transform_11(%arg0: i32) -> (i32, i32) {
    %c0_i32 = arith.constant 0 : i32
    %c0_i32_0 = arith.constant 0 : i32
    %c0_i32_1 = arith.constant 0 : i32
    return %c0_i32, %c0_i32_0 : i32, i32
  }
  func.func @transform_12(%arg0: i32) -> (i32, i32) {
    %c0_i32 = arith.constant 0 : i32
    %c0_i32_0 = arith.constant 0 : i32
    %c0_i32_1 = arith.constant 0 : i32
    return %c0_i32, %c0_i32_0 : i32, i32
  }
  func.func @transform_13(%arg0: i32) -> (i32, i32) {
    %c0_i32 = arith.constant 0 : i32
    %c0_i32_0 = arith.constant 0 : i32
    %c0_i32_1 = arith.constant 0 : i32
    return %c0_i32, %c0_i32_0 : i32, i32
  }
  func.func @transform_14(%arg0: i32) -> (i32, i32) {
    %c0_i32 = arith.constant 0 : i32
    %c0_i32_0 = arith.constant 0 : i32
    %c0_i32_1 = arith.constant 0 : i32
    return %c0_i32, %c0_i32_0 : i32, i32
  }
  func.func @transform_15(%arg0: i32) -> (i32, i32, i32) {
    %c0_i32 = arith.constant 0 : i32
    %c0_i32_0 = arith.constant 0 : i32
    %c0_i32_1 = arith.constant 0 : i32
    return %arg0, %c0_i32, %c0_i32_0 : i32, i32, i32
  }
  func.func @transform_16(%arg0: i32) -> (i32, i32, i32, i32) {
    %c0_i32 = arith.constant 0 : i32
    %c0_i32_0 = arith.constant 0 : i32
    %c0_i32_1 = arith.constant 0 : i32
    %c0_i32_2 = arith.constant 0 : i32
    return %arg0, %c0_i32, %c0_i32_0, %c0_i32_1 : i32, i32, i32, i32
  }
}

</mosaic_0001>

<llo_original>
// kernel: tpu_custom_call.1
$region0: #{tpu_custom_call.1}
  #allocation0 [shape = 'u32[]', space=smem, size = 0x4, offset = 0x4, fixed_abs, tag = 'smem constant byte address 0x4 - core index']
  #allocation1 [shape = 'u32[144,128]{1,0:T(1,128)}', space=vmem, size = 0x12000, scoped, tag = 'internal scratch']
  #allocation2 [shape = 'f32[8,32]{1,0:T(8,128)}', space=vmem, size = 0x1000, scoped, tag = 'scratch operand']
  %s0 = inlined_call_operand.hbm [shape: f32[2,8,32], index: 0, kind: input, shape index: {}]
  %s1 = inlined_call_operand.hbm [shape: f32[2,8,32], index: 1, kind: input, shape index: {}]
  %s2 = inlined_call_operand.hbm [shape: f32[2,8,32], index: 2, kind: input, shape index: {}]
  %s3 = inlined_call_operand.hbm [shape: f32[8,8], index: 3, kind: input, shape index: {}]
  %s4 = inlined_call_operand.hbm [shape: f32[32,32], index: 4, kind: input, shape index: {}]
  %s5 = inlined_call_operand.vmem [shape: f32[1,32], index: 5, kind: input, shape index: {}]
  %s6 = inlined_call_operand.hbm [shape: f32[32,32], index: 6, kind: input, shape index: {}]
  %s7 = inlined_call_operand.vmem [shape: f32[1,32], index: 7, kind: input, shape index: {}]
  %s8 = inlined_call_operand.hbm [shape: f32[32,32], index: 8, kind: input, shape index: {}]
  %s9 = inlined_call_operand.vmem [shape: f32[1,32], index: 9, kind: input, shape index: {}]
  %s10 = inlined_call_operand.vmem [shape: f32[32,32], index: 10, kind: input, shape index: {}]
  %s11 = inlined_call_operand.vmem [shape: f32[1,32], index: 11, kind: input, shape index: {}]
  %s12 = inlined_call_operand.vmem [shape: f32[1,4], index: 12, kind: input, shape index: {}]
  %s13 = inlined_call_operand.vmem [shape: f32[1,32], index: 13, kind: input, shape index: {}]
  %s14 = inlined_call_operand.vmem [shape: f32[1,32], index: 14, kind: input, shape index: {}]
  %s15 = inlined_call_operand.hbm [shape: f32[2,8,32], index: 15, kind: output, shape index: {0}]
  %s16 = inlined_call_operand.hbm [shape: f32[2,4,8,8], index: 16, kind: output, shape index: {1}]
  %17 = xla_tuple %s15, %s16
  %s18 = sld [smem:[#allocation0]]
  $region129: #{tpu_custom_call.1} parent=0
    _
  %s20 = ssub.s32 1, %s18
  %s21 = scalar_select 0, %s20, %s18
  $region1: #{tpu_custom_call.1} parent=0
    #allocation3 [shape = 'u8[8192]{0}', space=vmem, size = 0x2000, scoped, tag = 'input window, operand 0']
    #allocation4 [shape = 's32[2]{0}', space=sflag, size = 0x8, scoped, tag = 'scoped memory for tpu_custom_call.1']
    #allocation5 [shape = 's32[2]{0}', space=sflag, size = 0x8, scoped, tag = 'scoped memory for tpu_custom_call.1']
    #allocation6 [shape = 'u8[8192]{0}', space=vmem, size = 0x2000, scoped, tag = 'input window, operand 1']
    #allocation7 [shape = 's32[2]{0}', space=sflag, size = 0x8, scoped, tag = 'scoped memory for tpu_custom_call.1']
    #allocation8 [shape = 'u8[8192]{0}', space=vmem, size = 0x2000, scoped, tag = 'input window, operand 2']
    #allocation9 [shape = 'u8[4096]{0}', space=vmem, size = 0x1000, scoped, tag = 'input window, operand 3, single buffered']
    #allocation10 [shape = 's32[1]{0}', space=sflag, size = 0x4, scoped, tag = 'scoped memory for tpu_custom_call.1']
    #allocation11 [shape = 'u8[16384]{0}', space=vmem, size = 0x4000, scoped, tag = 'input window, operand 4, single buffered']
    #allocation12 [shape = 'u8[16384]{0}', space=vmem, size = 0x4000, scoped, tag = 'input window, operand 6, single buffered']
    #allocation13 [shape = 's32[1]{0}', space=sflag, size = 0x4, scoped, tag = 'scoped memory for tpu_custom_call.1']
    #allocation14 [shape = 'u8[16384]{0}', space=vmem, size = 0x4000, scoped, tag = 'input window, operand 8, single buffered']
    #allocation15 [shape = 'u8[8192]{0}', space=vmem, size = 0x2000, scoped, tag = 'output window, operand 0']
    #allocation16 [shape = 'u8[32768]{0}', space=vmem, size = 0x8000, scoped, tag = 'output window, operand 1']
    #allocation17 [shape = 's32[2]{0}', space=sflag, size = 0x8, scoped, tag = 'scoped memory for tpu_custom_call.1']
    %22 = vsyncpa [#allocation4], 0
    %s23 = scalar_lea.sflag [#allocation4], 1
    %24 = vsyncpa %s23, 0
    %25 = vsyncpa [#allocation7], 0
    %s26 = scalar_lea.sflag [#allocation7], 1
    %27 = vsyncpa %s26, 0
    %28 = vsyncpa [#allocation10], 0
    %29 = vsyncpa [#allocation13], 0
    %30 = vsyncpa [#allocation5], 0
    %s31 = scalar_lea.sflag [#allocation5], 1
    %32 = vsyncpa %s31, 0
    %33 = vsyncpa [#allocation17], 0
    %s34 = scalar_lea.sflag [#allocation17], 1
    %35 = vsyncpa %s34, 0
    loop: start=0, step=1, limit=4
    $region2: #{tpu_custom_call.1} parent=1 // loop_pre_header
      _
    $region3: #{tpu_custom_call.1} parent=1 // loop_header
      %s37 = sphi 0, %s41
      %p38 = scmp.ge.s32.totalorder %s37, 4
      %s47 = sphi 0, %s49
      %s50 = sphi 0, %s47
      %s51 = sphi 0, %s50
      %s67 = sphi 0, %s51
      %s73 = sphi 0, %s75
      %s76 = sphi 0, %s73
      %s77 = sphi 0, %s76
      %s93 = sphi 0, %s77
      %s99 = sphi 0, %s101
      %s102 = sphi 0, %s99
      %s103 = sphi 0, %s102
      %s119 = sphi 0, %s103
      %s123 = sphi 0, %s123
      %s125 = sphi 0, %s123
      %s126 = sphi 0, %s125
      %s140 = sphi 0, %s126
      %s144 = sphi 0, %s144
      %s146 = sphi 0, %s144
      %s147 = sphi 0, %s146
      %s161 = sphi 0, %s147
      %s165 = sphi 0, %s165
      %s167 = sphi 0, %s165
      %s168 = sphi 0, %s167
      %s182 = sphi 0, %s168
      %s186 = sphi 0, %s186
      %s188 = sphi 0, %s186
      %s189 = sphi 0, %s188
      %s203 = sphi 0, %s189
      %s207 = sphi 0, %s207
      %s209 = sphi 0, %s207
      %s210 = sphi 0, %s209
      %s224 = sphi 0, %s210
      %s228 = sphi 0, %s228
      %s230 = sphi 0, %s228
      %s231 = sphi 0, %s230
      %s245 = sphi 0, %s231
      %s249 = sphi 0, %s249
      %s251 = sphi 0, %s249
      %s252 = sphi 0, %s251
      %s266 = sphi 0, %s252
      %s270 = sphi 0, %s270
      %s272 = sphi 0, %s270
      %s273 = sphi 0, %s272
      %s287 = sphi 0, %s273
      %s291 = sphi 0, %s291
      %s293 = sphi 0, %s291
      %s294 = sphi 0, %s293
      %s308 = sphi 0, %s294
      %s312 = sphi 0, %s312
      %s314 = sphi 0, %s312
      %s315 = sphi 0, %s314
      %s329 = sphi 0, %s315
      %s333 = sphi 0, %s333
      %s335 = sphi 0, %s333
      %s336 = sphi 0, %s335
      %s350 = sphi 0, %s336
      %s354 = sphi 0, %s354
      %s356 = sphi 0, %s354
      %s357 = sphi 0, %s356
      %s371 = sphi 0, %s357
      %s377 = sphi 0, %s379
      %s380 = sphi 0, %s377
      %s381 = sphi 0, %s380
      %s397 = sphi 0, %s381
      %s403 = sphi 0, %s405
      %s406 = sphi 0, %s403
      %s407 = sphi 0, %s406
      %s423 = sphi 0, %s407
    $region4: #{tpu_custom_call.1} parent=1 // loop_header_branch
      %40 = sbr.rel (%p38) target = $region8
    $region5: #{tpu_custom_call.1} parent=1 // loop_body
      %s42 = ssub.s32 %s37, 1
      %s43 = ssub.s32 %s37, 2
      %s44 = sadd.s32 %s37, 1
      %s45 = ssub.s32 %s37, %s44
      %p46 = scmp.eq.s32.totalorder %s45, 0
      %s48 = sadd.s32 %s47, 1
      %s49 = scalar_select %p46, %s47, %s48
      %p52 = pneg %p46
      %p53 = scmp.eq.s32.totalorder %s37, 1
      %p54 = por %p52, %p53
      %p55 = scmp.ne.s32.totalorder %s47, %s50
      %p56 = scmp.eq.s32.totalorder %s37, 0
      %p57 = por %p55, %p56
      %p58 = scmp.ne.s32.totalorder %s47, %s50
      %p59 = scmp.eq.s32.totalorder %s42, 1
      %p60 = por %p58, %p59
      %p61 = scmp.ne.s32.totalorder %s50, %s51
      %p62 = scmp.eq.s32.totalorder %s42, 0
      %p63 = por %p61, %p62
      %p64 = scmp.ne.s32.totalorder %s50, %s51
      %p65 = scmp.eq.s32.totalorder %s43, 1
      %p66 = por %p64, %p65
      %p68 = scmp.ne.s32.totalorder %s51, %s67
      %p69 = scmp.eq.s32.totalorder %s43, 0
      %p70 = por %p68, %p69
      %s71 = ssub.s32 %s37, %s44
      %p72 = scmp.eq.s32.totalorder %s71, 0
      %s74 = sadd.s32 %s73, 1
      %s75 = scalar_select %p72, %s73, %s74
      %p78 = pneg %p72
      %p79 = scmp.eq.s32.totalorder %s37, 1
      %p80 = por %p78, %p79
      %p81 = scmp.ne.s32.totalorder %s73, %s76
      %p82 = scmp.eq.s32.totalorder %s37, 0
      %p83 = por %p81, %p82
      %p84 = scmp.ne.s32.totalorder %s73, %s76
      %p85 = scmp.eq.s32.totalorder %s42, 1
      %p86 = por %p84, %p85
      %p87 = scmp.ne.s32.totalorder %s76, %s77
      %p88 = scmp.eq.s32.totalorder %s42, 0
      %p89 = por %p87, %p88
      %p90 = scmp.ne.s32.totalorder %s76, %s77
      %p91 = scmp.eq.s32.totalorder %s43, 1
      %p92 = por %p90, %p91
      %p94 = scmp.ne.s32.totalorder %s77, %s93
      %p95 = scmp.eq.s32.totalorder %s43, 0
      %p96 = por %p94, %p95
      %s97 = ssub.s32 %s37, %s44
      %p98 = scmp.eq.s32.totalorder %s97, 0
      %s100 = sadd.s32 %s99, 1
      %s101 = scalar_select %p98, %s99, %s100
      %p104 = pneg %p98
      %p105 = scmp.eq.s32.totalorder %s37, 1
      %p106 = por %p104, %p105
      %p107 = scmp.ne.s32.totalorder %s99, %s102
      %p108 = scmp.eq.s32.totalorder %s37, 0
      %p109 = por %p107, %p108
      %p110 = scmp.ne.s32.totalorder %s99, %s102
      %p111 = scmp.eq.s32.totalorder %s42, 1
      %p112 = por %p110, %p111
      %p113 = scmp.ne.s32.totalorder %s102, %s103
      %p114 = scmp.eq.s32.totalorder %s42, 0
      %p115 = por %p113, %p114
      %p116 = scmp.ne.s32.totalorder %s102, %s103
      %p117 = scmp.eq.s32.totalorder %s43, 1
      %p118 = por %p116, %p117
      %p120 = scmp.ne.s32.totalorder %s103, %s119
      %p121 = scmp.eq.s32.totalorder %s43, 0
      %p122 = por %p120, %p121
      %s124 = sadd.s32 %s123, 1
      %p127 = scmp.eq.s32.totalorder %s37, 1
      %p128 = scmp.ne.s32.totalorder %s123, %s125
      %p129 = scmp.eq.s32.totalorder %s37, 0
      %p130 = por %p128, %p129
      %p131 = scmp.ne.s32.totalorder %s123, %s125
      %p132 = scmp.eq.s32.totalorder %s42, 1
      %p133 = por %p131, %p132
      %p134 = scmp.ne.s32.totalorder %s125, %s126
      %p135 = scmp.eq.s32.totalorder %s42, 0
      %p136 = por %p134, %p135
      %p137 = scmp.ne.s32.totalorder %s125, %s126
      %p138 = scmp.eq.s32.totalorder %s43, 1
      %p139 = por %p137, %p138
      %p141 = scmp.ne.s32.totalorder %s126, %s140
      %p142 = scmp.eq.s32.totalorder %s43, 0
      %p143 = por %p141, %p142
      %s145 = sadd.s32 %s144, 1
      %p148 = scmp.eq.s32.totalorder %s37, 1
      %p149 = scmp.ne.s32.totalorder %s144, %s146
      %p150 = scmp.eq.s32.totalorder %s37, 0
      %p151 = por %p149, %p150
      %p152 = scmp.ne.s32.totalorder %s144, %s146
      %p153 = scmp.eq.s32.totalorder %s42, 1
      %p154 = por %p152, %p153
      %p155 = scmp.ne.s32.totalorder %s146, %s147
      %p156 = scmp.eq.s32.totalorder %s42, 0
      %p157 = por %p155, %p156
      %p158 = scmp.ne.s32.totalorder %s146, %s147
      %p159 = scmp.eq.s32.totalorder %s43, 1
      %p160 = por %p158, %p159
      %p162 = scmp.ne.s32.totalorder %s147, %s161
      %p163 = scmp.eq.s32.totalorder %s43, 0
      %p164 = por %p162, %p163
      %s166 = sadd.s32 %s165, 1
      %p169 = scmp.eq.s32.totalorder %s37, 1
      %p170 = scmp.ne.s32.totalorder %s165, %s167
      %p171 = scmp.eq.s32.totalorder %s37, 0
      %p172 = por %p170, %p171
      %p173 = scmp.ne.s32.totalorder %s165, %s167
      %p174 = scmp.eq.s32.totalorder %s42, 1
      %p175 = por %p173, %p174
      %p176 = scmp.ne.s32.totalorder %s167, %s168
      %p177 = scmp.eq.s32.totalorder %s42, 0
      %p178 = por %p176, %p177
      %p179 = scmp.ne.s32.totalorder %s167, %s168
      %p180 = scmp.eq.s32.totalorder %s43, 1
      %p181 = por %p179, %p180
      %p183 = scmp.ne.s32.totalorder %s168, %s182
      %p184 = scmp.eq.s32.totalorder %s43, 0
      %p185 = por %p183, %p184
      %s187 = sadd.s32 %s186, 1
      %p190 = scmp.eq.s32.totalorder %s37, 1
      %p191 = scmp.ne.s32.totalorder %s186, %s188
      %p192 = scmp.eq.s32.totalorder %s37, 0
      %p193 = por %p191, %p192
      %p194 = scmp.ne.s32.totalorder %s186, %s188
      %p195 = scmp.eq.s32.totalorder %s42, 1
      %p196 = por %p194, %p195
      %p197 = scmp.ne.s32.totalorder %s188, %s189
      %p198 = scmp.eq.s32.totalorder %s42, 0
      %p199 = por %p197, %p198
      %p200 = scmp.ne.s32.totalorder %s188, %s189
      %p201 = scmp.eq.s32.totalorder %s43, 1
      %p202 = por %p200, %p201
      %p204 = scmp.ne.s32.totalorder %s189, %s203
      %p205 = scmp.eq.s32.totalorder %s43, 0
      %p206 = por %p204, %p205
      %s208 = sadd.s32 %s207, 1
      %p211 = scmp.eq.s32.totalorder %s37, 1
      %p212 = scmp.ne.s32.totalorder %s207, %s209
      %p213 = scmp.eq.s32.totalorder %s37, 0
      %p214 = por %p212, %p213
      %p215 = scmp.ne.s32.totalorder %s207, %s209
      %p216 = scmp.eq.s32.totalorder %s42, 1
      %p217 = por %p215, %p216
      %p218 = scmp.ne.s32.totalorder %s209, %s210
      %p219 = scmp.eq.s32.totalorder %s42, 0
      %p220 = por %p218, %p219
      %p221 = scmp.ne.s32.totalorder %s209, %s210
      %p222 = scmp.eq.s32.totalorder %s43, 1
      %p223 = por %p221, %p222
      %p225 = scmp.ne.s32.totalorder %s210, %s224
      %p226 = scmp.eq.s32.totalorder %s43, 0
      %p227 = por %p225, %p226
      %s229 = sadd.s32 %s228, 1
      %p232 = scmp.eq.s32.totalorder %s37, 1
      %p233 = scmp.ne.s32.totalorder %s228, %s230
      %p234 = scmp.eq.s32.totalorder %s37, 0
      %p235 = por %p233, %p234
      %p236 = scmp.ne.s32.totalorder %s228, %s230
      %p237 = scmp.eq.s32.totalorder %s42, 1
      %p238 = por %p236, %p237
      %p239 = scmp.ne.s32.totalorder %s230, %s231
      %p240 = scmp.eq.s32.totalorder %s42, 0
      %p241 = por %p239, %p240
      %p242 = scmp.ne.s32.totalorder %s230, %s231
      %p243 = scmp.eq.s32.totalorder %s43, 1
      %p244 = por %p242, %p243
      %p246 = scmp.ne.s32.totalorder %s231, %s245
      %p247 = scmp.eq.s32.totalorder %s43, 0
      %p248 = por %p246, %p247
      %s250 = sadd.s32 %s249, 1
      %p253 = scmp.eq.s32.totalorder %s37, 1
      %p254 = scmp.ne.s32.totalorder %s249, %s251
      %p255 = scmp.eq.s32.totalorder %s37, 0
      %p256 = por %p254, %p255
      %p257 = scmp.ne.s32.totalorder %s249, %s251
      %p258 = scmp.eq.s32.totalorder %s42, 1
      %p259 = por %p257, %p258
      %p260 = scmp.ne.s32.totalorder %s251, %s252
      %p261 = scmp.eq.s32.totalorder %s42, 0
      %p262 = por %p260, %p261
      %p263 = scmp.ne.s32.totalorder %s251, %s252
      %p264 = scmp.eq.s32.totalorder %s43, 1
      %p265 = por %p263, %p264
      %p267 = scmp.ne.s32.totalorder %s252, %s266
      %p268 = scmp.eq.s32.totalorder %s43, 0
      %p269 = por %p267, %p268
      %s271 = sadd.s32 %s270, 1
      %p274 = scmp.eq.s32.totalorder %s37, 1
      %p275 = scmp.ne.s32.totalorder %s270, %s272
      %p276 = scmp.eq.s32.totalorder %s37, 0
      %p277 = por %p275, %p276
      %p278 = scmp.ne.s32.totalorder %s270, %s272
      %p279 = scmp.eq.s32.totalorder %s42, 1
      %p280 = por %p278, %p279
      %p281 = scmp.ne.s32.totalorder %s272, %s273
      %p282 = scmp.eq.s32.totalorder %s42, 0
      %p283 = por %p281, %p282
      %p284 = scmp.ne.s32.totalorder %s272, %s273
      %p285 = scmp.eq.s32.totalorder %s43, 1
      %p286 = por %p284, %p285
      %p288 = scmp.ne.s32.totalorder %s273, %s287
      %p289 = scmp.eq.s32.totalorder %s43, 0
      %p290 = por %p288, %p289
      %s292 = sadd.s32 %s291, 1
      %p295 = scmp.eq.s32.totalorder %s37, 1
      %p296 = scmp.ne.s32.totalorder %s291, %s293
      %p297 = scmp.eq.s32.totalorder %s37, 0
      %p298 = por %p296, %p297
      %p299 = scmp.ne.s32.totalorder %s291, %s293
      %p300 = scmp.eq.s32.totalorder %s42, 1
      %p301 = por %p299, %p300
      %p302 = scmp.ne.s32.totalorder %s293, %s294
      %p303 = scmp.eq.s32.totalorder %s42, 0
      %p304 = por %p302, %p303
      %p305 = scmp.ne.s32.totalorder %s293, %s294
      %p306 = scmp.eq.s32.totalorder %s43, 1
      %p307 = por %p305, %p306
      %p309 = scmp.ne.s32.totalorder %s294, %s308
      %p310 = scmp.eq.s32.totalorder %s43, 0
      %p311 = por %p309, %p310
      %s313 = sadd.s32 %s312, 1
      %p316 = scmp.eq.s32.totalorder %s37, 1
      %p317 = scmp.ne.s32.totalorder %s312, %s314
      %p318 = scmp.eq.s32.totalorder %s37, 0
      %p319 = por %p317, %p318
      %p320 = scmp.ne.s32.totalorder %s312, %s314
      %p321 = scmp.eq.s32.totalorder %s42, 1
      %p322 = por %p320, %p321
      %p323 = scmp.ne.s32.totalorder %s314, %s315
      %p324 = scmp.eq.s32.totalorder %s42, 0
      %p325 = por %p323, %p324
      %p326 = scmp.ne.s32.totalorder %s314, %s315
      %p327 = scmp.eq.s32.totalorder %s43, 1
      %p328 = por %p326, %p327
      %p330 = scmp.ne.s32.totalorder %s315, %s329
      %p331 = scmp.eq.s32.totalorder %s43, 0
      %p332 = por %p330, %p331
      %s334 = sadd.s32 %s333, 1
      %p337 = scmp.eq.s32.totalorder %s37, 1
      %p338 = scmp.ne.s32.totalorder %s333, %s335
      %p339 = scmp.eq.s32.totalorder %s37, 0
      %p340 = por %p338, %p339
      %p341 = scmp.ne.s32.totalorder %s333, %s335
      %p342 = scmp.eq.s32.totalorder %s42, 1
      %p343 = por %p341, %p342
      %p344 = scmp.ne.s32.totalorder %s335, %s336
      %p345 = scmp.eq.s32.totalorder %s42, 0
      %p346 = por %p344, %p345
      %p347 = scmp.ne.s32.totalorder %s335, %s336
      %p348 = scmp.eq.s32.totalorder %s43, 1
      %p349 = por %p347, %p348
      %p351 = scmp.ne.s32.totalorder %s336, %s350
      %p352 = scmp.eq.s32.totalorder %s43, 0
      %p353 = por %p351, %p352
      %s355 = sadd.s32 %s354, 1
      %p358 = scmp.eq.s32.totalorder %s37, 1
      %p359 = scmp.ne.s32.totalorder %s354, %s356
      %p360 = scmp.eq.s32.totalorder %s37, 0
      %p361 = por %p359, %p360
      %p362 = scmp.ne.s32.totalorder %s354, %s356
      %p363 = scmp.eq.s32.totalorder %s42, 1
      %p364 = por %p362, %p363
      %p365 = scmp.ne.s32.totalorder %s356, %s357
      %p366 = scmp.eq.s32.totalorder %s42, 0
      %p367 = por %p365, %p366
      %p368 = scmp.ne.s32.totalorder %s356, %s357
      %p369 = scmp.eq.s32.totalorder %s43, 1
      %p370 = por %p368, %p369
      %p372 = scmp.ne.s32.totalorder %s357, %s371
      %p373 = scmp.eq.s32.totalorder %s43, 0
      %p374 = por %p372, %p373
      %s375 = ssub.s32 %s37, %s44
      %p376 = scmp.eq.s32.totalorder %s375, 0
      %s378 = sadd.s32 %s377, 1
      %s379 = scalar_select %p376, %s377, %s378
      %p382 = pneg %p376
      %p383 = scmp.eq.s32.totalorder %s37, 1
      %p384 = por %p382, %p383
      %p385 = scmp.ne.s32.totalorder %s377, %s380
      %p386 = scmp.eq.s32.totalorder %s37, 0
      %p387 = por %p385, %p386
      %p388 = scmp.ne.s32.totalorder %s377, %s380
      %p389 = scmp.eq.s32.totalorder %s42, 1
      %p390 = por %p388, %p389
      %p391 = scmp.ne.s32.totalorder %s380, %s381
      %p392 = scmp.eq.s32.totalorder %s42, 0
      %p393 = por %p391, %p392
      %p394 = scmp.ne.s32.totalorder %s380, %s381
      %p395 = scmp.eq.s32.totalorder %s43, 1
      %p396 = por %p394, %p395
      %p398 = scmp.ne.s32.totalorder %s381, %s397
      %p399 = scmp.eq.s32.totalorder %s43, 0
      %p400 = por %p398, %p399
      %s401 = ssub.s32 %s37, %s44
      %p402 = scmp.eq.s32.totalorder %s401, 0
      %s404 = sadd.s32 %s403, 1
      %s405 = scalar_select %p402, %s403, %s404
      %p408 = pneg %p402
      %p409 = scmp.eq.s32.totalorder %s37, 1
      %p410 = por %p408, %p409
      %p411 = scmp.ne.s32.totalorder %s403, %s406
      %p412 = scmp.eq.s32.totalorder %s37, 0
      %p413 = por %p411, %p412
      %p414 = scmp.ne.s32.totalorder %s403, %s406
      %p415 = scmp.eq.s32.totalorder %s42, 1
      %p416 = por %p414, %p415
      %p417 = scmp.ne.s32.totalorder %s406, %s407
      %p418 = scmp.eq.s32.totalorder %s42, 0
      %p419 = por %p417, %p418
      %p420 = scmp.ne.s32.totalorder %s406, %s407
      %p421 = scmp.eq.s32.totalorder %s43, 1
      %p422 = por %p420, %p421
      %p424 = scmp.ne.s32.totalorder %s407, %s423
      %p425 = scmp.eq.s32.totalorder %s43, 0
      %p426 = por %p424, %p425
      %p427 = scmp.le.s32.totalorder 1, %s37
      %p428 = scmp.lt.s32.totalorder %s37, 3
      %p429 = pnand %p427, %p428
      %p430 = pneg %p429
      // Predicated region
      $region9: #{tpu_custom_call.1} parent=5 // pred_check
        _
      $region10: #{tpu_custom_call.1} parent=5 // pred_check_branch
        %432 = sbr.rel (%p429) target = $region12
      $region11: #{tpu_custom_call.1} parent=5 // pred_region
        %s433 = ssub.s32 %s37, 1
        // Predicated region
        $region13: #{tpu_custom_call.1} parent=11 // pred_check
          %p434 = pneg %p136
        $region14: #{tpu_custom_call.1} parent=11 // pred_check_branch
          %436 = sbr.rel (%p434) target = $region16
        $region15: #{tpu_custom_call.1} parent=11 // pred_region
          %s438 = ssub.s32 128, 128
          %439 = vsyncadd [#allocation10], %s438
          %s441 = sshll.u32 [#allocation9], 4
          %s442 = int_to_ptr.vmem [resolvable:$true] %s441
          %444 = dma.hbm_to_vmem [thread:$0]  %s3, 128, %s442, [#allocation10]
        $region16: #{tpu_custom_call.1} parent=11 // pred_fallthru
          _
        // Predicated region
        $region17: #{tpu_custom_call.1} parent=11 // pred_check
          %p445 = pneg %p157
        $region18: #{tpu_custom_call.1} parent=11 // pred_check_branch
          %447 = sbr.rel (%p445) target = $region20
        $region19: #{tpu_custom_call.1} parent=11 // pred_region
          %s449 = ssub.s32 512, 512
          %450 = vsyncadd [#allocation10], %s449
          %s451 = sshll.u32 [#allocation11], 4
          %s452 = int_to_ptr.vmem [resolvable:$true] %s451
          %457 = dma.hbm_to_vmem [thread:$0]  %s4, 512, %s452, [#allocation10], 128, 128, 8
        $region20: #{tpu_custom_call.1} parent=11 // pred_fallthru
          _
        // Predicated region
        $region21: #{tpu_custom_call.1} parent=11 // pred_check
          %p458 = pneg %p178
        $region22: #{tpu_custom_call.1} parent=11 // pred_check_branch
          %460 = sbr.rel (%p458) target = $region24
        $region23: #{tpu_custom_call.1} parent=11 // pred_region
          _
        $region24: #{tpu_custom_call.1} parent=11 // pred_fallthru
          _
        // Predicated region
        $region25: #{tpu_custom_call.1} parent=11 // pred_check
          %p461 = pneg %p199
        $region26: #{tpu_custom_call.1} parent=11 // pred_check_branch
          %463 = sbr.rel (%p461) target = $region28
        $region27: #{tpu_custom_call.1} parent=11 // pred_region
          %s465 = ssub.s32 512, 512
          %466 = vsyncadd [#allocation13], %s465
          %s467 = sshll.u32 [#allocation12], 4
          %s468 = int_to_ptr.vmem [resolvable:$true] %s467
          %473 = dma.hbm_to_vmem [thread:$0]  %s6, 512, %s468, [#allocation13], 128, 128, 8
        $region28: #{tpu_custom_call.1} parent=11 // pred_fallthru
          _
        // Predicated region
        $region29: #{tpu_custom_call.1} parent=11 // pred_check
          %p474 = pneg %p220
        $region30: #{tpu_custom_call.1} parent=11 // pred_check_branch
          %476 = sbr.rel (%p474) target = $region32
        $region31: #{tpu_custom_call.1} parent=11 // pred_region
          _
        $region32: #{tpu_custom_call.1} parent=11 // pred_fallthru
          _
        // Predicated region
        $region33: #{tpu_custom_call.1} parent=11 // pred_check
          %p477 = pneg %p241
        $region34: #{tpu_custom_call.1} parent=11 // pred_check_branch
          %479 = sbr.rel (%p477) target = $region36
        $region35: #{tpu_custom_call.1} parent=11 // pred_region
          %s481 = ssub.s32 512, 512
          %482 = vsyncadd [#allocation13], %s481
          %s483 = sshll.u32 [#allocation14], 4
          %s484 = int_to_ptr.vmem [resolvable:$true] %s483
          %489 = dma.hbm_to_vmem [thread:$0]  %s8, 512, %s484, [#allocation13], 128, 128, 8
        $region36: #{tpu_custom_call.1} parent=11 // pred_fallthru
          _
        // Predicated region
        $region37: #{tpu_custom_call.1} parent=11 // pred_check
          %p490 = pneg %p262
        $region38: #{tpu_custom_call.1} parent=11 // pred_check_branch
          %492 = sbr.rel (%p490) target = $region40
        $region39: #{tpu_custom_call.1} parent=11 // pred_region
          _
        $region40: #{tpu_custom_call.1} parent=11 // pred_fallthru
          _
        // Predicated region
        $region41: #{tpu_custom_call.1} parent=11 // pred_check
          %p493 = pneg %p283
        $region42: #{tpu_custom_call.1} parent=11 // pred_check_branch
          %495 = sbr.rel (%p493) target = $region44
        $region43: #{tpu_custom_call.1} parent=11 // pred_region
          _
        $region44: #{tpu_custom_call.1} parent=11 // pred_fallthru
          _
        // Predicated region
        $region45: #{tpu_custom_call.1} parent=11 // pred_check
          %p496 = pneg %p304
        $region46: #{tpu_custom_call.1} parent=11 // pred_check_branch
          %498 = sbr.rel (%p496) target = $region48
        $region47: #{tpu_custom_call.1} parent=11 // pred_region
          _
        $region48: #{tpu_custom_call.1} parent=11 // pred_fallthru
          _
        // Predicated region
        $region49: #{tpu_custom_call.1} parent=11 // pred_check
          %p499 = pneg %p325
        $region50: #{tpu_custom_call.1} parent=11 // pred_check_branch
          %501 = sbr.rel (%p499) target = $region52
        $region51: #{tpu_custom_call.1} parent=11 // pred_region
          _
        $region52: #{tpu_custom_call.1} parent=11 // pred_fallthru
          _
        // Predicated region
        $region53: #{tpu_custom_call.1} parent=11 // pred_check
          %p502 = pneg %p346
        $region54: #{tpu_custom_call.1} parent=11 // pred_check_branch
          %504 = sbr.rel (%p502) target = $region56
        $region55: #{tpu_custom_call.1} parent=11 // pred_region
          _
        $region56: #{tpu_custom_call.1} parent=11 // pred_fallthru
          _
        // Predicated region
        $region57: #{tpu_custom_call.1} parent=11 // pred_check
          %p505 = pneg %p367
        $region58: #{tpu_custom_call.1} parent=11 // pred_check_branch
          %507 = sbr.rel (%p505) target = $region60
        $region59: #{tpu_custom_call.1} parent=11 // pred_region
          _
        $region60: #{tpu_custom_call.1} parent=11 // pred_fallthru
          _
      $region12: #{tpu_custom_call.1} parent=5 // pred_fallthru
        _
      %p508 = scmp.lt.s32.totalorder %s37, 2
      // Predicated region
      $region61: #{tpu_custom_call.1} parent=5 // pred_check
        %p509 = pneg %p508
      $region62: #{tpu_custom_call.1} parent=5 // pred_check_branch
        %511 = sbr.rel (%p509) target = $region64
      $region63: #{tpu_custom_call.1} parent=5 // pred_region
        // Predicated region
        $region65: #{tpu_custom_call.1} parent=63 // pred_check
          %p512 = pneg %p57
        $region66: #{tpu_custom_call.1} parent=63 // pred_check_branch
          %514 = sbr.rel (%p512) target = $region68
        $region67: #{tpu_custom_call.1} parent=63 // pred_region
          %s515 = sand.u32 %s47, 1
          %s516 = scalar_lea.sflag [#allocation4], %s515
          %s517 = sand.u32 %s47, 1
          %s518 = smul.addr %s517, 8
          %s519 = scalar_lea.vmem [#allocation3], %s518
          %s521 = ssub.s32 128, 128
          %522 = vsyncadd %s516, %s521
          %s523 = smul.addr %s37, 128
          %s524 = scalar_lea.hbm %s0, %s523
          %s526 = sshll.u32 %s519, 4
          %s527 = int_to_ptr.vmem [resolvable:$true] %s526
          %529 = dma.hbm_to_vmem [thread:$0]  %s524, 128, %s527, %s516
        $region68: #{tpu_custom_call.1} parent=63 // pred_fallthru
          _
        // Predicated region
        $region69: #{tpu_custom_call.1} parent=63 // pred_check
          %p530 = pneg %p83
        $region70: #{tpu_custom_call.1} parent=63 // pred_check_branch
          %532 = sbr.rel (%p530) target = $region72
        $region71: #{tpu_custom_call.1} parent=63 // pred_region
          %s533 = sand.u32 %s37, 1
          %s534 = scalar_lea.sflag [#allocation7], %s533
          %s535 = sand.u32 %s73, 1
          %s536 = smul.addr %s535, 8
          %s537 = scalar_lea.vmem [#allocation6], %s536
          %s539 = ssub.s32 128, 128
          %540 = vsyncadd %s534, %s539
          %s541 = smul.addr %s37, 128
          %s542 = scalar_lea.hbm %s1, %s541
          %s544 = sshll.u32 %s537, 4
          %s545 = int_to_ptr.vmem [resolvable:$true] %s544
          %547 = dma.hbm_to_vmem [thread:$0]  %s542, 128, %s545, %s534
        $region72: #{tpu_custom_call.1} parent=63 // pred_fallthru
          _
        // Predicated region
        $region73: #{tpu_custom_call.1} parent=63 // pred_check
          %p548 = pneg %p109
        $region74: #{tpu_custom_call.1} parent=63 // pred_check_branch
          %550 = sbr.rel (%p548) target = $region76
        $region75: #{tpu_custom_call.1} parent=63 // pred_region
          %s551 = sand.u32 %s37, 1
          %s552 = scalar_lea.sflag [#allocation7], %s551
          %s553 = sand.u32 %s99, 1
          %s554 = smul.addr %s553, 8
          %s555 = scalar_lea.vmem [#allocation8], %s554
          %s557 = ssub.s32 128, 128
          %558 = vsyncadd %s552, %s557
          %s559 = smul.addr %s37, 128
          %s560 = scalar_lea.hbm %s2, %s559
          %s562 = sshll.u32 %s555, 4
          %s563 = int_to_ptr.vmem [resolvable:$true] %s562
          %565 = dma.hbm_to_vmem [thread:$0]  %s560, 128, %s563, %s552
        $region76: #{tpu_custom_call.1} parent=63 // pred_fallthru
          _
      $region64: #{tpu_custom_call.1} parent=5 // pred_fallthru
        _
      %p566 = scmp.le.s32.totalorder 1, %s37
      %p567 = scmp.lt.s32.totalorder %s37, 3
      %p568 = pnand %p566, %p567
      %p569 = pneg %p568
      // Predicated region
      $region77: #{tpu_custom_call.1} parent=5 // pred_check
        _
      $region78: #{tpu_custom_call.1} parent=5 // pred_check_branch
        %571 = sbr.rel (%p568) target = $region80
      $region79: #{tpu_custom_call.1} parent=5 // pred_region
        %s572 = ssub.s32 %s37, 1
        %s573 = sand.u32 %s50, 1
        %s574 = scalar_lea.sflag [#allocation4], %s573
        %s575 = sand.u32 %s50, 1
        %s576 = smul.addr %s575, 8
        %s577 = scalar_lea.vmem [#allocation3], %s576
        // Predicated region
        $region81: #{tpu_custom_call.1} parent=79 // pred_check
          %p578 = pneg %p63
        $region82: #{tpu_custom_call.1} parent=79 // pred_check_branch
          %580 = sbr.rel (%p578) target = $region84
        $region83: #{tpu_custom_call.1} parent=79 // pred_region
          %581 = dma.done %s574, 128
        $region84: #{tpu_custom_call.1} parent=79 // pred_fallthru
          _
        %s582 = sand.u32 %s42, 1
        %s583 = scalar_lea.sflag [#allocation7], %s582
        %s584 = sand.u32 %s76, 1
        %s585 = smul.addr %s584, 8
        %s586 = scalar_lea.vmem [#allocation6], %s585
        // Predicated region
        $region85: #{tpu_custom_call.1} parent=79 // pred_check
          %p587 = pneg %p89
        $region86: #{tpu_custom_call.1} parent=79 // pred_check_branch
          %589 = sbr.rel (%p587) target = $region88
        $region87: #{tpu_custom_call.1} parent=79 // pred_region
          %590 = dma.done %s583, 128
        $region88: #{tpu_custom_call.1} parent=79 // pred_fallthru
          _
        %s591 = sand.u32 %s42, 1
        %s592 = scalar_lea.sflag [#allocation7], %s591
        %s593 = sand.u32 %s102, 1
        %s594 = smul.addr %s593, 8
        %s595 = scalar_lea.vmem [#allocation8], %s594
        // Predicated region
        $region89: #{tpu_custom_call.1} parent=79 // pred_check
          %p596 = pneg %p115
        $region90: #{tpu_custom_call.1} parent=79 // pred_check_branch
          %598 = sbr.rel (%p596) target = $region92
        $region91: #{tpu_custom_call.1} parent=79 // pred_region
          %599 = dma.done %s592, 128
        $region92: #{tpu_custom_call.1} parent=79 // pred_fallthru
          _
        // Predicated region
        $region93: #{tpu_custom_call.1} parent=79 // pred_check
          %p600 = pneg %p136
        $region94: #{tpu_custom_call.1} parent=79 // pred_check_branch
          %602 = sbr.rel (%p600) target = $region96
        $region95: #{tpu_custom_call.1} parent=79 // pred_region
          %603 = dma.done [#allocation10], 128
        $region96: #{tpu_custom_call.1} parent=79 // pred_fallthru
          _
        // Predicated region
        $region97: #{tpu_custom_call.1} parent=79 // pred_check
          %p604 = pneg %p157
        $region98: #{tpu_custom_call.1} parent=79 // pred_check_branch
          %606 = sbr.rel (%p604) target = $region100
        $region99: #{tpu_custom_call.1} parent=79 // pred_region
          %607 = dma.done [#allocation10], 512
        $region100: #{tpu_custom_call.1} parent=79 // pred_fallthru
          _
        // Predicated region
        $region101: #{tpu_custom_call.1} parent=79 // pred_check
          %p608 = pneg %p199
        $region102: #{tpu_custom_call.1} parent=79 // pred_check_branch
          %610 = sbr.rel (%p608) target = $region104
        $region103: #{tpu_custom_call.1} parent=79 // pred_region
          %611 = dma.done [#allocation13], 512
        $region104: #{tpu_custom_call.1} parent=79 // pred_fallthru
          _
        // Predicated region
        $region105: #{tpu_custom_call.1} parent=79 // pred_check
          %p612 = pneg %p241
        $region106: #{tpu_custom_call.1} parent=79 // pred_check_branch
          %614 = sbr.rel (%p612) target = $region108
        $region107: #{tpu_custom_call.1} parent=79 // pred_region
          %615 = dma.done [#allocation13], 512
        $region108: #{tpu_custom_call.1} parent=79 // pred_fallthru
          _
        %s616 = sand.u32 %s50, 1
        %s617 = scalar_lea.sflag [#allocation4], %s616
        %s618 = sand.u32 %s50, 1
        %s619 = smul.addr %s618, 8
        %s620 = scalar_lea.vmem [#allocation3], %s619
        %p621 = pneg %p63
        %p622 = pneg %p60
        %s623 = sand.u32 %s42, 1
        %s624 = scalar_lea.sflag [#allocation7], %s623
        %s625 = sand.u32 %s76, 1
        %s626 = smul.addr %s625, 8
        %s627 = scalar_lea.vmem [#allocation6], %s626
        %p628 = pneg %p89
        %p629 = pneg %p86
        %s630 = sand.u32 %s42, 1
        %s631 = scalar_lea.sflag [#allocation7], %s630
        %s632 = sand.u32 %s102, 1
        %s633 = smul.addr %s632, 8
        %s634 = scalar_lea.vmem [#allocation8], %s633
        %p635 = pneg %p115
        %p636 = pneg %p112
        %p637 = pneg %p136
        %p638 = pneg %p133
        %p639 = pneg %p157
        %p640 = pneg %p154
        %p641 = pneg %p178
        %p642 = pneg %p175
        %p643 = pneg %p199
        %p644 = pneg %p196
        %p645 = pneg %p220
        %p646 = pneg %p217
        %p647 = pneg %p241
        %p648 = pneg %p238
        %p649 = pneg %p262
        %p650 = pneg %p259
        %p651 = pneg %p283
        %p652 = pneg %p280
        %p653 = pneg %p304
        %p654 = pneg %p301
        %p655 = pneg %p325
        %p656 = pneg %p322
        %p657 = pneg %p346
        %p658 = pneg %p343
        %p659 = pneg %p367
        %p660 = pneg %p364
        %p661 = pneg %p393
        %p662 = pneg %p390
        %s663 = sand.u32 %s380, 1
        %s664 = scalar_lea.sflag [#allocation5], %s663
        %s665 = sand.u32 %s380, 1
        %s666 = smul.addr %s665, 8
        %s667 = scalar_lea.vmem [#allocation15], %s666
        %p668 = pneg %p419
        %p669 = pneg %p416
        %s670 = sand.u32 %s406, 1
        %s671 = scalar_lea.sflag [#allocation17], %s670
        %s672 = sand.u32 %s406, 1
        %s673 = smul.addr %s672, 32
        %s674 = scalar_lea.vmem [#allocation16], %s673
        %v675 = vld [vmem:[%s577] sm:$0xff]
        %v676 = vld [vmem:[%s586] sm:$0xff]
        %v677 = vld [vmem:[%s595] sm:$0xff]
        %v678 = vld [vmem:[#allocation11] sm:$0xff]
        %v679 = vld [vmem:[#allocation11 + $0x8] sm:$0xff]
        %v680 = vld [vmem:[#allocation11 + $0x10] sm:$0xff]
        %v681 = vld [vmem:[#allocation11 + $0x18] sm:$0xff]
        %v682 = vld [vmem:[%s5] sm:$0x1]
        %v684 = vlaneseq
        %v685 = vshrl.u32 %v684, 7
        %v686 = vsub.s32 0, %v685
        %v687 = vrot.slane %v682, %v686
        %vm689 = vcmask 261120
        %v691 = vsel %vm689, %v675, 0
        %693 = vmatprep.subr.mxu0 0.0
        %694 = vmatpush1.msra.mxu0 %v678
        %695 = vmatprep.subr.mxu0 0.0
        %696 = vmatpush1.msra.mxu0 %v679
        %697 = vmatprep.subr.mxu0 0.0
        %698 = vmatpush1.msra.mxu0 %v680
        %699 = vmatprep.subr.mxu0 0.0
        %700 = vmatpush1.msra.mxu0 %v681
        %701 = vmatprep.subr.mxu0 0.0
        %702 = vmatpush1.msra.mxu0 0.0
        %703 = vmatprep.subr.mxu0 0.0
        %704 = vmatpush1.msra.mxu0 0.0
        %705 = vmatprep.subr.mxu0 0.0
        %706 = vmatpush1.msra.mxu0 0.0
        %707 = vmatprep.subr.mxu0 0.0
        %708 = vmatpush1.msra.mxu0 0.0
        %709 = vmatprep.subr.mxu0 0.0
        %710 = vmatpush1.msra.mxu0 0.0
        %711 = vmatprep.subr.mxu0 0.0
        %712 = vmatpush1.msra.mxu0 0.0
        %713 = vmatprep.subr.mxu0 0.0
        %714 = vmatpush1.msra.mxu0 0.0
        %715 = vmatprep.subr.mxu0 0.0
        %716 = vmatpush1.msra.mxu0 0.0
        %717 = vmatprep.subr.mxu0 0.0
        %718 = vmatpush1.msra.mxu0 0.0
        %719 = vmatprep.subr.mxu0 0.0
        %720 = vmatpush1.msra.mxu0 0.0
        %721 = vmatprep.subr.mxu0 0.0
        %722 = vmatpush1.msra.mxu0 0.0
        %723 = vmatprep.subr.mxu0 0.0
        %724 = vmatpush1.msra.mxu0 0.0
        %725 = vmatprep.subr.mxu0 0.0
        %726 = vmatpush1.msra.mxu0 0.0
        %727 = vmatprep.subr.mxu0 0.0
        %728 = vmatpush1.msra.mxu0 0.0
        %729 = vmatprep.subr.mxu0 0.0
        %730 = vmatpush1.msra.mxu0 0.0
        %731 = vmatprep.subr.mxu0 0.0
        %732 = vmatpush1.msra.mxu0 0.0
        %733 = vmatprep.subr.mxu0 0.0
        %734 = vmatpush1.msra.mxu0 0.0
        %735 = vmatprep.subr.mxu0 0.0
        %736 = vmatpush1.msra.mxu0 0.0
        %737 = vmatprep.subr.mxu0 0.0
        %738 = vmatpush1.msra.mxu0 0.0
        %739 = vmatprep.subr.mxu0 0.0
        %740 = vmatpush1.msra.mxu0 0.0
        %741 = vmatprep.subr.mxu0 0.0
        %742 = vmatpush1.msra.mxu0 0.0
        %743 = vmatprep.subr.mxu0 0.0
        %744 = vmatpush1.msra.mxu0 0.0
        %745 = vmatprep.subr.mxu0 0.0
        %746 = vmatpush1.msra.mxu0 0.0
        %747 = vmatprep.subr.mxu0 0.0
        %748 = vmatpush1.msra.mxu0 0.0
        %749 = vmatprep.subr.mxu0 0.0
        %750 = vmatpush1.msra.mxu0 0.0
        %751 = vmatprep.subr.mxu0 0.0
        %752 = vmatpush1.msra.mxu0 0.0
        %753 = vmatprep.subr.mxu0 0.0
        %754 = vmatpush1.msra.mxu0 0.0
        %755 = vmatprep.subr.mxu0 0.0
        %756 = vmatpush1.msra.mxu0 0.0
        %757 = vmatprep.mubr.f32.mxu0 0.0
        %758 = vmatmul.mubr.f32.gmra.mrb[0].mxu0 %v691
        %v759 = vpop.f32.mrb[0].mxu0
        %v760 = vadd.f32 %v687, %v759
        %v761 = vpop.f32.mrb[0].mxu0
        %762 = vdwg.mxu0
        %v763 = vld [vmem:[#allocation12] sm:$0xff]
        %v764 = vld [vmem:[#allocation12 + $0x8] sm:$0xff]
        %v765 = vld [vmem:[#allocation12 + $0x10] sm:$0xff]
        %v766 = vld [vmem:[#allocation12 + $0x18] sm:$0xff]
        %v767 = vld [vmem:[%s7] sm:$0x1]
        %v769 = vlaneseq
        %v770 = vshrl.u32 %v769, 7
        %v771 = vsub.s32 0, %v770
        %v772 = vrot.slane %v767, %v771
        %v775 = vsel %vm689, %v676, 0
        %777 = vmatprep.subr.mxu0 0.0
        %778 = vmatpush1.msra.mxu0 %v763
        %779 = vmatprep.subr.mxu0 0.0
        %780 = vmatpush1.msra.mxu0 %v764
        %781 = vmatprep.subr.mxu0 0.0
        %782 = vmatpush1.msra.mxu0 %v765
        %783 = vmatprep.subr.mxu0 0.0
        %784 = vmatpush1.msra.mxu0 %v766
        %785 = vmatprep.subr.mxu0 0.0
        %786 = vmatpush1.msra.mxu0 0.0
        %787 = vmatprep.subr.mxu0 0.0
        %788 = vmatpush1.msra.mxu0 0.0
        %789 = vmatprep.subr.mxu0 0.0
        %790 = vmatpush1.msra.mxu0 0.0
        %791 = vmatprep.subr.mxu0 0.0
        %792 = vmatpush1.msra.mxu0 0.0
        %793 = vmatprep.subr.mxu0 0.0
        %794 = vmatpush1.msra.mxu0 0.0
        %795 = vmatprep.subr.mxu0 0.0
        %796 = vmatpush1.msra.mxu0 0.0
        %797 = vmatprep.subr.mxu0 0.0
        %798 = vmatpush1.msra.mxu0 0.0
        %799 = vmatprep.subr.mxu0 0.0
        %800 = vmatpush1.msra.mxu0 0.0
        %801 = vmatprep.subr.mxu0 0.0
        %802 = vmatpush1.msra.mxu0 0.0
        %803 = vmatprep.subr.mxu0 0.0
        %804 = vmatpush1.msra.mxu0 0.0
        %805 = vmatprep.subr.mxu0 0.0
        %806 = vmatpush1.msra.mxu0 0.0
        %807 = vmatprep.subr.mxu0 0.0
        %808 = vmatpush1.msra.mxu0 0.0
        %809 = vmatprep.subr.mxu0 0.0
        %810 = vmatpush1.msra.mxu0 0.0
        %811 = vmatprep.subr.mxu0 0.0
        %812 = vmatpush1.msra.mxu0 0.0
        %813 = vmatprep.subr.mxu0 0.0
        %814 = vmatpush1.msra.mxu0 0.0
        %815 = vmatprep.subr.mxu0 0.0
        %816 = vmatpush1.msra.mxu0 0.0
        %817 = vmatprep.subr.mxu0 0.0
        %818 = vmatpush1.msra.mxu0 0.0
        %819 = vmatprep.subr.mxu0 0.0
        %820 = vmatpush1.msra.mxu0 0.0
        %821 = vmatprep.subr.mxu0 0.0
        %822 = vmatpush1.msra.mxu0 0.0
        %823 = vmatprep.subr.mxu0 0.0
        %824 = vmatpush1.msra.mxu0 0.0
        %825 = vmatprep.subr.mxu0 0.0
        %826 = vmatpush1.msra.mxu0 0.0
        %827 = vmatprep.subr.mxu0 0.0
        %828 = vmatpush1.msra.mxu0 0.0
        %829 = vmatprep.subr.mxu0 0.0
        %830 = vmatpush1.msra.mxu0 0.0
        %831 = vmatprep.subr.mxu0 0.0
        %832 = vmatpush1.msra.mxu0 0.0
        %833 = vmatprep.subr.mxu0 0.0
        %834 = vmatpush1.msra.mxu0 0.0
        %835 = vmatprep.subr.mxu0 0.0
        %836 = vmatpush1.msra.mxu0 0.0
        %837 = vmatprep.subr.mxu0 0.0
        %838 = vmatpush1.msra.mxu0 0.0
        %839 = vmatprep.subr.mxu0 0.0
        %840 = vmatpush1.msra.mxu0 0.0
        %841 = vmatprep.mubr.f32.mxu0 0.0
        %842 = vmatmul.mubr.f32.gmra.mrb[0].mxu0 %v775
        %v843 = vpop.f32.mrb[0].mxu0
        %v844 = vadd.f32 %v772, %v843
        %v845 = vpop.f32.mrb[0].mxu0
        %846 = vdwg.mxu0
        %v847 = vld [vmem:[#allocation14] sm:$0xff]
        %v848 = vld [vmem:[#allocation14 + $0x8] sm:$0xff]
        %v849 = vld [vmem:[#allocation14 + $0x10] sm:$0xff]
        %v850 = vld [vmem:[#allocation14 + $0x18] sm:$0xff]
        %v851 = vld [vmem:[%s9] sm:$0x1]
        %v853 = vlaneseq
        %v854 = vshrl.u32 %v853, 7
        %v855 = vsub.s32 0, %v854
        %v856 = vrot.slane %v851, %v855
        %v859 = vsel %vm689, %v677, 0
        %861 = vmatprep.subr.mxu0 0.0
        %862 = vmatpush1.msra.mxu0 %v847
        %863 = vmatprep.subr.mxu0 0.0
        %864 = vmatpush1.msra.mxu0 %v848
        %865 = vmatprep.subr.mxu0 0.0
        %866 = vmatpush1.msra.mxu0 %v849
        %867 = vmatprep.subr.mxu0 0.0
        %868 = vmatpush1.msra.mxu0 %v850
        %869 = vmatprep.subr.mxu0 0.0
        %870 = vmatpush1.msra.mxu0 0.0
        %871 = vmatprep.subr.mxu0 0.0
        %872 = vmatpush1.msra.mxu0 0.0
        %873 = vmatprep.subr.mxu0 0.0
        %874 = vmatpush1.msra.mxu0 0.0
        %875 = vmatprep.subr.mxu0 0.0
        %876 = vmatpush1.msra.mxu0 0.0
        %877 = vmatprep.subr.mxu0 0.0
        %878 = vmatpush1.msra.mxu0 0.0
        %879 = vmatprep.subr.mxu0 0.0
        %880 = vmatpush1.msra.mxu0 0.0
        %881 = vmatprep.subr.mxu0 0.0
        %882 = vmatpush1.msra.mxu0 0.0
        %883 = vmatprep.subr.mxu0 0.0
        %884 = vmatpush1.msra.mxu0 0.0
        %885 = vmatprep.subr.mxu0 0.0
        %886 = vmatpush1.msra.mxu0 0.0
        %887 = vmatprep.subr.mxu0 0.0
        %888 = vmatpush1.msra.mxu0 0.0
        %889 = vmatprep.subr.mxu0 0.0
        %890 = vmatpush1.msra.mxu0 0.0
        %891 = vmatprep.subr.mxu0 0.0
        %892 = vmatpush1.msra.mxu0 0.0
        %893 = vmatprep.subr.mxu0 0.0
        %894 = vmatpush1.msra.mxu0 0.0
        %895 = vmatprep.subr.mxu0 0.0
        %896 = vmatpush1.msra.mxu0 0.0
        %897 = vmatprep.subr.mxu0 0.0
        %898 = vmatpush1.msra.mxu0 0.0
        %899 = vmatprep.subr.mxu0 0.0
        %900 = vmatpush1.msra.mxu0 0.0
        %901 = vmatprep.subr.mxu0 0.0
        %902 = vmatpush1.msra.mxu0 0.0
        %903 = vmatprep.subr.mxu0 0.0
        %904 = vmatpush1.msra.mxu0 0.0
        %905 = vmatprep.subr.mxu0 0.0
        %906 = vmatpush1.msra.mxu0 0.0
        %907 = vmatprep.subr.mxu0 0.0
        %908 = vmatpush1.msra.mxu0 0.0
        %909 = vmatprep.subr.mxu0 0.0
        %910 = vmatpush1.msra.mxu0 0.0
        %911 = vmatprep.subr.mxu0 0.0
        %912 = vmatpush1.msra.mxu0 0.0
        %913 = vmatprep.subr.mxu0 0.0
        %914 = vmatpush1.msra.mxu0 0.0
        %915 = vmatprep.subr.mxu0 0.0
        %916 = vmatpush1.msra.mxu0 0.0
        %917 = vmatprep.subr.mxu0 0.0
        %918 = vmatpush1.msra.mxu0 0.0
        %919 = vmatprep.subr.mxu0 0.0
        %920 = vmatpush1.msra.mxu0 0.0
        %921 = vmatprep.subr.mxu0 0.0
        %922 = vmatpush1.msra.mxu0 0.0
        %923 = vmatprep.subr.mxu0 0.0
        %924 = vmatpush1.msra.mxu0 0.0
        %925 = vmatprep.mubr.f32.mxu0 0.0
        %926 = vmatmul.mubr.f32.gmra.mrb[0].mxu0 %v859
        %v927 = vpop.f32.mrb[0].mxu0
        %v928 = vadd.f32 %v856, %v927
        %v929 = vpop.f32.mrb[0].mxu0
        %930 = vdwg.mxu0
        %v931 = vld [vmem:[#allocation9] sm:$0xff]
        %vm932 = vcmp.gt.f32.partialorder %v931, 0.5
        %v933 = vlaneseq
        %v934 = vshrl.u32 %v933, 7
        %v935 = vlaneseq
        %v936 = vand.u32 %v935, 127
        %v937 = vsub.s32 %v936, %v934
        %v938 = vcvt.s32.f32 %v937
        %v939 = vand.u32 2147483647, %v938
        %vm940 = vcmp.gt.s32.totalorder %v934, %v936
        %v941 = vsel %vm940, 1, 0
        %v942 = vcvt.s32.f32 %v941
        %vm943 = vcmask 64512
        %v945 = vsel %vm943, %v760, 0
        %v948 = vsel %vm943, %v844, 0
        %950 = vmatprep.subr.mxu0 0.0
        %951 = vmatpush1.xpose.msra.mxu0 %v948
        %952 = vmatprep.subr.mxu0 0.0
        %953 = vmatpush1.xpose.msra.mxu0 0.0
        %954 = vmatprep.subr.mxu0 0.0
        %955 = vmatpush1.xpose.msra.mxu0 0.0
        %956 = vmatprep.subr.mxu0 0.0
        %957 = vmatpush1.xpose.msra.mxu0 0.0
        %958 = vmatprep.subr.mxu0 0.0
        %959 = vmatpush1.xpose.msra.mxu0 0.0
        %960 = vmatprep.subr.mxu0 0.0
        %961 = vmatpush1.xpose.msra.mxu0 0.0
        %962 = vmatprep.subr.mxu0 0.0
        %963 = vmatpush1.xpose.msra.mxu0 0.0
        %964 = vmatprep.subr.mxu0 0.0
        %965 = vmatpush1.xpose.msra.mxu0 0.0
        %966 = vmatprep.subr.mxu0 0.0
        %967 = vmatpush1.xpose.msra.mxu0 0.0
        %968 = vmatprep.subr.mxu0 0.0
        %969 = vmatpush1.xpose.msra.mxu0 0.0
        %970 = vmatprep.subr.mxu0 0.0
        %971 = vmatpush1.xpose.msra.mxu0 0.0
        %972 = vmatprep.subr.mxu0 0.0
        %973 = vmatpush1.xpose.msra.mxu0 0.0
        %974 = vmatprep.subr.mxu0 0.0
        %975 = vmatpush1.xpose.msra.mxu0 0.0
        %976 = vmatprep.subr.mxu0 0.0
        %977 = vmatpush1.xpose.msra.mxu0 0.0
        %978 = vmatprep.subr.mxu0 0.0
        %979 = vmatpush1.xpose.msra.mxu0 0.0
        %980 = vmatprep.subr.mxu0 0.0
        %981 = vmatpush1.xpose.msra.mxu0 0.0
        %982 = vmatprep.subr.mxu0 0.0
        %983 = vmatpush1.xpose.msra.mxu0 0.0
        %984 = vmatprep.subr.mxu0 0.0
        %985 = vmatpush1.xpose.msra.mxu0 0.0
        %986 = vmatprep.subr.mxu0 0.0
        %987 = vmatpush1.xpose.msra.mxu0 0.0
        %988 = vmatprep.subr.mxu0 0.0
        %989 = vmatpush1.xpose.msra.mxu0 0.0
        %990 = vmatprep.subr.mxu0 0.0
        %991 = vmatpush1.xpose.msra.mxu0 0.0
        %992 = vmatprep.subr.mxu0 0.0
        %993 = vmatpush1.xpose.msra.mxu0 0.0
        %994 = vmatprep.subr.mxu0 0.0
        %995 = vmatpush1.xpose.msra.mxu0 0.0
        %996 = vmatprep.subr.mxu0 0.0
        %997 = vmatpush1.xpose.msra.mxu0 0.0
        %998 = vmatprep.subr.mxu0 0.0
        %999 = vmatpush1.xpose.msra.mxu0 0.0
        %1000 = vmatprep.subr.mxu0 0.0
        %1001 = vmatpush1.xpose.msra.mxu0 0.0
        %1002 = vmatprep.subr.mxu0 0.0
        %1003 = vmatpush1.xpose.msra.mxu0 0.0
        %1004 = vmatprep.subr.mxu0 0.0
        %1005 = vmatpush1.xpose.msra.mxu0 0.0
        %1006 = vmatprep.subr.mxu0 0.0
        %1007 = vmatpush1.xpose.msra.mxu0 0.0
        %1008 = vmatprep.subr.mxu0 0.0
        %1009 = vmatpush1.xpose.msra.mxu0 0.0
        %1010 = vmatprep.subr.mxu0 0.0
        %1011 = vmatpush1.xpose.msra.mxu0 0.0
        %1012 = vmatprep.subr.mxu0 0.0
        %1013 = vmatpush1.xpose.msra.mxu0 0.0
        %1014 = vmatprep.mubr.f32.mxu0 0.0
        %1015 = vmatmul.mubr.f32.gmra.mrb[0].mxu0 %v945
        %v1016 = vpop.f32.mrb[0].mxu0
        %v1017 = vadd.f32 0.0, %v1016
        %v1018 = vpop.f32.mrb[0].mxu0
        %1019 = vdwg.mxu0
        %v1020 = vrcp.pop 2.828427
        %v1021 = vmul.f32 %v1017, %v1020
        %v1022 = vsel %vm932, %v1021, -1e+32
        %v1023 = vsel %vm943, %v1022, -inf
        %1024 = vmax.xlane.f32.xlu0 %v1023
        %v1025 = vpop.xlane.xlu0 %1024
        %v1026 = vsub.f32 %v1022, %v1025
        %v1027 = vmul.f32 %v1026, 1.442695
        %v1028 = vpow.pop %v1027
        %v1029 = vsel %vm943, %v1028, 0.0
        %1030 = vadd.xlane.f32.xlu0 %v1029
        %v1031 = vpop.xlane.xlu0 %1030
        %v1032 = vrcp.pop %v1031
        %v1033 = vmul.f32 %v1028, %v1032
        %v1034 = vmul.f32 %v1033, %v931
        %v1036 = vsel %vm943, %v1034, 0
        %1038 = vmatprep.subr.mxu0 0.0
        %1039 = vmatpush1.msra.mxu0 %v942
        %1040 = vmatprep.subr.mxu0 0.0
        %1041 = vmatpush1.msra.mxu0 0.0
        %1042 = vmatprep.subr.mxu0 0.0
        %1043 = vmatpush1.msra.mxu0 0.0
        %1044 = vmatprep.subr.mxu0 0.0
        %1045 = vmatpush1.msra.mxu0 0.0
        %1046 = vmatprep.subr.mxu0 0.0
        %1047 = vmatpush1.msra.mxu0 0.0
        %1048 = vmatprep.subr.mxu0 0.0
        %1049 = vmatpush1.msra.mxu0 0.0
        %1050 = vmatprep.subr.mxu0 0.0
        %1051 = vmatpush1.msra.mxu0 0.0
        %1052 = vmatprep.subr.mxu0 0.0
        %1053 = vmatpush1.msra.mxu0 0.0
        %1054 = vmatprep.subr.mxu0 0.0
        %1055 = vmatpush1.msra.mxu0 0.0
        %1056 = vmatprep.subr.mxu0 0.0
        %1057 = vmatpush1.msra.mxu0 0.0
        %1058 = vmatprep.subr.mxu0 0.0
        %1059 = vmatpush1.msra.mxu0 0.0
        %1060 = vmatprep.subr.mxu0 0.0
        %1061 = vmatpush1.msra.mxu0 0.0
        %1062 = vmatprep.subr.mxu0 0.0
        %1063 = vmatpush1.msra.mxu0 0.0
        %1064 = vmatprep.subr.mxu0 0.0
        %1065 = vmatpush1.msra.mxu0 0.0
        %1066 = vmatprep.subr.mxu0 0.0
        %1067 = vmatpush1.msra.mxu0 0.0
        %1068 = vmatprep.subr.mxu0 0.0
        %1069 = vmatpush1.msra.mxu0 0.0
        %1070 = vmatprep.subr.mxu0 0.0
        %1071 = vmatpush1.msra.mxu0 0.0
        %1072 = vmatprep.subr.mxu0 0.0
        %1073 = vmatpush1.msra.mxu0 0.0
        %1074 = vmatprep.subr.mxu0 0.0
        %1075 = vmatpush1.msra.mxu0 0.0
        %1076 = vmatprep.subr.mxu0 0.0
        %1077 = vmatpush1.msra.mxu0 0.0
        %1078 = vmatprep.subr.mxu0 0.0
        %1079 = vmatpush1.msra.mxu0 0.0
        %1080 = vmatprep.subr.mxu0 0.0
        %1081 = vmatpush1.msra.mxu0 0.0
        %1082 = vmatprep.subr.mxu0 0.0
        %1083 = vmatpush1.msra.mxu0 0.0
        %1084 = vmatprep.subr.mxu0 0.0
        %1085 = vmatpush1.msra.mxu0 0.0
        %1086 = vmatprep.subr.mxu0 0.0
        %1087 = vmatpush1.msra.mxu0 0.0
        %1088 = vmatprep.subr.mxu0 0.0
        %1089 = vmatpush1.msra.mxu0 0.0
        %1090 = vmatprep.subr.mxu0 0.0
        %1091 = vmatpush1.msra.mxu0 0.0
        %1092 = vmatprep.subr.mxu0 0.0
        %1093 = vmatpush1.msra.mxu0 0.0
        %1094 = vmatprep.subr.mxu0 0.0
        %1095 = vmatpush1.msra.mxu0 0.0
        %1096 = vmatprep.subr.mxu0 0.0
        %1097 = vmatpush1.msra.mxu0 0.0
        %1098 = vmatprep.subr.mxu0 0.0
        %1099 = vmatpush1.msra.mxu0 0.0
        %1100 = vmatprep.subr.mxu0 0.0
        %1101 = vmatpush1.msra.mxu0 0.0
        %1102 = vmatprep.mubr.f32.mxu0 0.0
        %1103 = vmatmul.mubr.f32.gmra.mrb[0].mxu0 %v1036
        %v1104 = vpop.f32.mrb[0].mxu0
        %v1105 = vadd.f32 0.0, %v1104
        %v1106 = vpop.f32.mrb[0].mxu0
        %1107 = vdwg.mxu0
        %v1108 = vmul.f32 %v1105, %v939
        %v1109 = vmax.f32 %v1108, 0.0
        %v1110 = vrsqrt.pop %v1109
        %v1111 = vmul.f32 %v1109, %v1110
        %vm1112 = vcmp.eq.f32.partialorder %v1109, inf
        %v1113 = vsel %vm1112, %v1109, %v1111
        %vm1114 = vcmp.eq.f32.partialorder %v1109, 0.0
        %v1115 = vand.u32 %v1109, 2147483648
        %v1116 = vsel %vm1114, %v1115, %v1113
        %v1117 = vld [vmem:[%s12] sm:$0x1]
        %v1119 = vlaneseq
        %v1120 = vshrl.u32 %v1119, 7
        %v1121 = vsub.s32 0, %v1120
        %v1122 = vrot.slane %v1117, %v1121
        %1123 = vset.pattern.permute.xlu0 0
        %1124 = vperm.xlu0 %1123, %v1122
        %v1125 = vpop.permute.xlu0 %1124
        %v1127 = vmul.f32 %v1116, %v1125
        %v1128 = vmul.f32 %v1127, 1.442695
        %v1129 = vpow.pop %v1128
        %v1130 = vmax.f32 %v1129, 1e-05
        %v1131 = vmin.f32 %v1130, 100000.0
        %v1132 = vmul.f32 %v1021, %v1131
        %v1133 = vsel %vm932, %v1132, -1e+32
        %v1134 = vsel %vm943, %v1133, -inf
        %1135 = vmax.xlane.f32.xlu0 %v1134
        %v1136 = vpop.xlane.xlu0 %1135
        %v1137 = vsub.f32 %v1133, %v1136
        %v1138 = vmul.f32 %v1137, 1.442695
        %v1139 = vpow.pop %v1138
        %v1140 = vsel %vm943, %v1139, 0.0
        %1141 = vadd.xlane.f32.xlu0 %v1140
        %v1142 = vpop.xlane.xlu0 %1141
        %v1143 = vrcp.pop %v1142
        %v1144 = vmul.f32 %v1139, %v1143
        %1145 = vst.msk [vmem:[%s674] sm:$0xff] %vm943, %v1144
        %v1147 = vsel %vm943, %v1144, 0
        %1149 = vmatprep.subr.mxu0 0.0
        %1150 = vmatpush1.msra.mxu0 %v928
        %1151 = vmatprep.subr.mxu0 0.0
        %1152 = vmatpush1.msra.mxu0 0.0
        %1153 = vmatprep.subr.mxu0 0.0
        %1154 = vmatpush1.msra.mxu0 0.0
        %1155 = vmatprep.subr.mxu0 0.0
        %1156 = vmatpush1.msra.mxu0 0.0
        %1157 = vmatprep.subr.mxu0 0.0
        %1158 = vmatpush1.msra.mxu0 0.0
        %1159 = vmatprep.subr.mxu0 0.0
        %1160 = vmatpush1.msra.mxu0 0.0
        %1161 = vmatprep.subr.mxu0 0.0
        %1162 = vmatpush1.msra.mxu0 0.0
        %1163 = vmatprep.subr.mxu0 0.0
        %1164 = vmatpush1.msra.mxu0 0.0
        %1165 = vmatprep.subr.mxu0 0.0
        %1166 = vmatpush1.msra.mxu0 0.0
        %1167 = vmatprep.subr.mxu0 0.0
        %1168 = vmatpush1.msra.mxu0 0.0
        %1169 = vmatprep.subr.mxu0 0.0
        %1170 = vmatpush1.msra.mxu0 0.0
        %1171 = vmatprep.subr.mxu0 0.0
        %1172 = vmatpush1.msra.mxu0 0.0
        %1173 = vmatprep.subr.mxu0 0.0
        %1174 = vmatpush1.msra.mxu0 0.0
        %1175 = vmatprep.subr.mxu0 0.0
        %1176 = vmatpush1.msra.mxu0 0.0
        %1177 = vmatprep.subr.mxu0 0.0
        %1178 = vmatpush1.msra.mxu0 0.0
        %1179 = vmatprep.subr.mxu0 0.0
        %1180 = vmatpush1.msra.mxu0 0.0
        %1181 = vmatprep.subr.mxu0 0.0
        %1182 = vmatpush1.msra.mxu0 0.0
        %1183 = vmatprep.subr.mxu0 0.0
        %1184 = vmatpush1.msra.mxu0 0.0
        %1185 = vmatprep.subr.mxu0 0.0
        %1186 = vmatpush1.msra.mxu0 0.0
        %1187 = vmatprep.subr.mxu0 0.0
        %1188 = vmatpush1.msra.mxu0 0.0
        %1189 = vmatprep.subr.mxu0 0.0
        %1190 = vmatpush1.msra.mxu0 0.0
        %1191 = vmatprep.subr.mxu0 0.0
        %1192 = vmatpush1.msra.mxu0 0.0
        %1193 = vmatprep.subr.mxu0 0.0
        %1194 = vmatpush1.msra.mxu0 0.0
        %1195 = vmatprep.subr.mxu0 0.0
        %1196 = vmatpush1.msra.mxu0 0.0
        %1197 = vmatprep.subr.mxu0 0.0
        %1198 = vmatpush1.msra.mxu0 0.0
        %1199 = vmatprep.subr.mxu0 0.0
        %1200 = vmatpush1.msra.mxu0 0.0
        %1201 = vmatprep.subr.mxu0 0.0
        %1202 = vmatpush1.msra.mxu0 0.0
        %1203 = vmatprep.subr.mxu0 0.0
        %1204 = vmatpush1.msra.mxu0 0.0
        %1205 = vmatprep.subr.mxu0 0.0
        %1206 = vmatpush1.msra.mxu0 0.0
        %1207 = vmatprep.subr.mxu0 0.0
        %1208 = vmatpush1.msra.mxu0 0.0
        %1209 = vmatprep.subr.mxu0 0.0
        %1210 = vmatpush1.msra.mxu0 0.0
        %1211 = vmatprep.subr.mxu0 0.0
        %1212 = vmatpush1.msra.mxu0 0.0
        %1213 = vmatprep.mubr.f32.mxu0 0.0
        %1214 = vmatmul.mubr.f32.gmra.mrb[0].mxu0 %v1147
        %v1215 = vpop.f32.mrb[0].mxu0
        %v1216 = vadd.f32 0.0, %v1215
        %v1217 = vpop.f32.mrb[0].mxu0
        %1218 = vdwg.mxu0
        %1219 = vst.msk [vmem:[#allocation2] sm:$0xff] %vm943, %v1216
        %1220 = vrot.lane.b32.xlu0 %v760, 120
        %v1221 = vpop.permute.xlu0 %1220
        %1222 = vrot.lane.b32.xlu0 %v844, 120
        %v1223 = vpop.permute.xlu0 %1222
        %v1224 = vsel %vm943, %v1221, 0
        %v1226 = vsel %vm943, %v1223, 0
        %1228 = vmatprep.subr.mxu0 0.0
        %1229 = vmatpush1.xpose.msra.mxu0 %v1226
        %1230 = vmatprep.subr.mxu0 0.0
        %1231 = vmatpush1.xpose.msra.mxu0 0.0
        %1232 = vmatprep.subr.mxu0 0.0
        %1233 = vmatpush1.xpose.msra.mxu0 0.0
        %1234 = vmatprep.subr.mxu0 0.0
        %1235 = vmatpush1.xpose.msra.mxu0 0.0
        %1236 = vmatprep.subr.mxu0 0.0
        %1237 = vmatpush1.xpose.msra.mxu0 0.0
        %1238 = vmatprep.subr.mxu0 0.0
        %1239 = vmatpush1.xpose.msra.mxu0 0.0
        %1240 = vmatprep.subr.mxu0 0.0
        %1241 = vmatpush1.xpose.msra.mxu0 0.0
        %1242 = vmatprep.subr.mxu0 0.0
        %1243 = vmatpush1.xpose.msra.mxu0 0.0
        %1244 = vmatprep.subr.mxu0 0.0
        %1245 = vmatpush1.xpose.msra.mxu0 0.0
        %1246 = vmatprep.subr.mxu0 0.0
        %1247 = vmatpush1.xpose.msra.mxu0 0.0
        %1248 = vmatprep.subr.mxu0 0.0
        %1249 = vmatpush1.xpose.msra.mxu0 0.0
        %1250 = vmatprep.subr.mxu0 0.0
        %1251 = vmatpush1.xpose.msra.mxu0 0.0
        %1252 = vmatprep.subr.mxu0 0.0
        %1253 = vmatpush1.xpose.msra.mxu0 0.0
        %1254 = vmatprep.subr.mxu0 0.0
        %1255 = vmatpush1.xpose.msra.mxu0 0.0
        %1256 = vmatprep.subr.mxu0 0.0
        %1257 = vmatpush1.xpose.msra.mxu0 0.0
        %1258 = vmatprep.subr.mxu0 0.0
        %1259 = vmatpush1.xpose.msra.mxu0 0.0
        %1260 = vmatprep.subr.mxu0 0.0
        %1261 = vmatpush1.xpose.msra.mxu0 0.0
        %1262 = vmatprep.subr.mxu0 0.0
        %1263 = vmatpush1.xpose.msra.mxu0 0.0
        %1264 = vmatprep.subr.mxu0 0.0
        %1265 = vmatpush1.xpose.msra.mxu0 0.0
        %1266 = vmatprep.subr.mxu0 0.0
        %1267 = vmatpush1.xpose.msra.mxu0 0.0
        %1268 = vmatprep.subr.mxu0 0.0
        %1269 = vmatpush1.xpose.msra.mxu0 0.0
        %1270 = vmatprep.subr.mxu0 0.0
        %1271 = vmatpush1.xpose.msra.mxu0 0.0
        %1272 = vmatprep.subr.mxu0 0.0
        %1273 = vmatpush1.xpose.msra.mxu0 0.0
        %1274 = vmatprep.subr.mxu0 0.0
        %1275 = vmatpush1.xpose.msra.mxu0 0.0
        %1276 = vmatprep.subr.mxu0 0.0
        %1277 = vmatpush1.xpose.msra.mxu0 0.0
        %1278 = vmatprep.subr.mxu0 0.0
        %1279 = vmatpush1.xpose.msra.mxu0 0.0
        %1280 = vmatprep.subr.mxu0 0.0
        %1281 = vmatpush1.xpose.msra.mxu0 0.0
        %1282 = vmatprep.subr.mxu0 0.0
        %1283 = vmatpush1.xpose.msra.mxu0 0.0
        %1284 = vmatprep.subr.mxu0 0.0
        %1285 = vmatpush1.xpose.msra.mxu0 0.0
        %1286 = vmatprep.subr.mxu0 0.0
        %1287 = vmatpush1.xpose.msra.mxu0 0.0
        %1288 = vmatprep.subr.mxu0 0.0
        %1289 = vmatpush1.xpose.msra.mxu0 0.0
        %1290 = vmatprep.subr.mxu0 0.0
        %1291 = vmatpush1.xpose.msra.mxu0 0.0
        %1292 = vmatprep.mubr.f32.mxu0 0.0
        %1293 = vmatmul.mubr.f32.gmra.mrb[0].mxu0 %v1224
        %v1294 = vpop.f32.mrb[0].mxu0
        %v1295 = vadd.f32 0.0, %v1294
        %v1296 = vpop.f32.mrb[0].mxu0
        %1297 = vdwg.mxu0
        %v1298 = vmul.f32 %v1295, %v1020
        %v1299 = vsel %vm932, %v1298, -1e+32
        %v1300 = vsel %vm943, %v1299, -inf
        %1301 = vmax.xlane.f32.xlu0 %v1300
        %v1302 = vpop.xlane.xlu0 %1301
        %v1303 = vsub.f32 %v1299, %v1302
        %v1304 = vmul.f32 %v1303, 1.442695
        %v1305 = vpow.pop %v1304
        %v1306 = vsel %vm943, %v1305, 0.0
        %1307 = vadd.xlane.f32.xlu0 %v1306
        %v1308 = vpop.xlane.xlu0 %1307
        %v1309 = vrcp.pop %v1308
        %v1310 = vmul.f32 %v1305, %v1309
        %v1311 = vmul.f32 %v1310, %v931
        %v1313 = vsel %vm943, %v1311, 0
        %1315 = vmatprep.subr.mxu0 0.0
        %1316 = vmatpush1.msra.mxu0 %v942
        %1317 = vmatprep.subr.mxu0 0.0
        %1318 = vmatpush1.msra.mxu0 0.0
        %1319 = vmatprep.subr.mxu0 0.0
        %1320 = vmatpush1.msra.mxu0 0.0
        %1321 = vmatprep.subr.mxu0 0.0
        %1322 = vmatpush1.msra.mxu0 0.0
        %1323 = vmatprep.subr.mxu0 0.0
        %1324 = vmatpush1.msra.mxu0 0.0
        %1325 = vmatprep.subr.mxu0 0.0
        %1326 = vmatpush1.msra.mxu0 0.0
        %1327 = vmatprep.subr.mxu0 0.0
        %1328 = vmatpush1.msra.mxu0 0.0
        %1329 = vmatprep.subr.mxu0 0.0
        %1330 = vmatpush1.msra.mxu0 0.0
        %1331 = vmatprep.subr.mxu0 0.0
        %1332 = vmatpush1.msra.mxu0 0.0
        %1333 = vmatprep.subr.mxu0 0.0
        %1334 = vmatpush1.msra.mxu0 0.0
        %1335 = vmatprep.subr.mxu0 0.0
        %1336 = vmatpush1.msra.mxu0 0.0
        %1337 = vmatprep.subr.mxu0 0.0
        %1338 = vmatpush1.msra.mxu0 0.0
        %1339 = vmatprep.subr.mxu0 0.0
        %1340 = vmatpush1.msra.mxu0 0.0
        %1341 = vmatprep.subr.mxu0 0.0
        %1342 = vmatpush1.msra.mxu0 0.0
        %1343 = vmatprep.subr.mxu0 0.0
        %1344 = vmatpush1.msra.mxu0 0.0
        %1345 = vmatprep.subr.mxu0 0.0
        %1346 = vmatpush1.msra.mxu0 0.0
        %1347 = vmatprep.subr.mxu0 0.0
        %1348 = vmatpush1.msra.mxu0 0.0
        %1349 = vmatprep.subr.mxu0 0.0
        %1350 = vmatpush1.msra.mxu0 0.0
        %1351 = vmatprep.subr.mxu0 0.0
        %1352 = vmatpush1.msra.mxu0 0.0
        %1353 = vmatprep.subr.mxu0 0.0
        %1354 = vmatpush1.msra.mxu0 0.0
        %1355 = vmatprep.subr.mxu0 0.0
        %1356 = vmatpush1.msra.mxu0 0.0
        %1357 = vmatprep.subr.mxu0 0.0
        %1358 = vmatpush1.msra.mxu0 0.0
        %1359 = vmatprep.subr.mxu0 0.0
        %1360 = vmatpush1.msra.mxu0 0.0
        %1361 = vmatprep.subr.mxu0 0.0
        %1362 = vmatpush1.msra.mxu0 0.0
        %1363 = vmatprep.subr.mxu0 0.0
        %1364 = vmatpush1.msra.mxu0 0.0
        %1365 = vmatprep.subr.mxu0 0.0
        %1366 = vmatpush1.msra.mxu0 0.0
        %1367 = vmatprep.subr.mxu0 0.0
        %1368 = vmatpush1.msra.mxu0 0.0
        %1369 = vmatprep.subr.mxu0 0.0
        %1370 = vmatpush1.msra.mxu0 0.0
        %1371 = vmatprep.subr.mxu0 0.0
        %1372 = vmatpush1.msra.mxu0 0.0
        %1373 = vmatprep.subr.mxu0 0.0
        %1374 = vmatpush1.msra.mxu0 0.0
        %1375 = vmatprep.subr.mxu0 0.0
        %1376 = vmatpush1.msra.mxu0 0.0
        %1377 = vmatprep.subr.mxu0 0.0
        %1378 = vmatpush1.msra.mxu0 0.0
        %1379 = vmatprep.mubr.f32.mxu0 0.0
        %1380 = vmatmul.mubr.f32.gmra.mrb[0].mxu0 %v1313
        %v1381 = vpop.f32.mrb[0].mxu0
        %v1382 = vadd.f32 0.0, %v1381
        %v1383 = vpop.f32.mrb[0].mxu0
        %1384 = vdwg.mxu0
        %v1385 = vmul.f32 %v1382, %v939
        %v1386 = vmax.f32 %v1385, 0.0
        %v1387 = vrsqrt.pop %v1386
        %v1388 = vmul.f32 %v1386, %v1387
        %vm1389 = vcmp.eq.f32.partialorder %v1386, inf
        %v1390 = vsel %vm1389, %v1386, %v1388
        %vm1391 = vcmp.eq.f32.partialorder %v1386, 0.0
        %v1392 = vand.u32 %v1386, 2147483648
        %v1393 = vsel %vm1391, %v1392, %v1390
        %v1394 = vld [vmem:[%s12] sm:$0x1]
        %v1396 = vlaneseq
        %v1397 = vshrl.u32 %v1396, 7
        %v1398 = vsub.s32 0, %v1397
        %v1399 = vrot.slane %v1394, %v1398
        %1400 = vset.pattern.permute.xlu0 1
        %1401 = vperm.xlu0 %1400, %v1399
        %v1402 = vpop.permute.xlu0 %1401
        %v1404 = vmul.f32 %v1393, %v1402
        %v1405 = vmul.f32 %v1404, 1.442695
        %v1406 = vpow.pop %v1405
        %v1407 = vmax.f32 %v1406, 1e-05
        %v1408 = vmin.f32 %v1407, 100000.0
        %v1409 = vmul.f32 %v1298, %v1408
        %v1410 = vsel %vm932, %v1409, -1e+32
        %v1411 = vsel %vm943, %v1410, -inf
        %1412 = vmax.xlane.f32.xlu0 %v1411
        %v1413 = vpop.xlane.xlu0 %1412
        %v1414 = vsub.f32 %v1410, %v1413
        %v1415 = vmul.f32 %v1414, 1.442695
        %v1416 = vpow.pop %v1415
        %v1417 = vsel %vm943, %v1416, 0.0
        %1418 = vadd.xlane.f32.xlu0 %v1417
        %v1419 = vpop.xlane.xlu0 %1418
        %v1420 = vrcp.pop %v1419
        %v1421 = vmul.f32 %v1416, %v1420
        %s1422 = scalar_lea.vmem %s674, 8 [#allocation16]
        %1423 = vst.msk [vmem:[%s1422] sm:$0xff] %vm943, %v1421
        %1425 = vrot.lane.b32.xlu0 %v928, 120
        %v1426 = vpop.permute.xlu0 %1425
        %v1429 = vsel %vm943, %v1421, 0
        %1431 = vmatprep.subr.mxu0 0.0
        %1432 = vmatpush1.msra.mxu0 %v1426
        %1433 = vmatprep.subr.mxu0 0.0
        %1434 = vmatpush1.msra.mxu0 0.0
        %1435 = vmatprep.subr.mxu0 0.0
        %1436 = vmatpush1.msra.mxu0 0.0
        %1437 = vmatprep.subr.mxu0 0.0
        %1438 = vmatpush1.msra.mxu0 0.0
        %1439 = vmatprep.subr.mxu0 0.0
        %1440 = vmatpush1.msra.mxu0 0.0
        %1441 = vmatprep.subr.mxu0 0.0
        %1442 = vmatpush1.msra.mxu0 0.0
        %1443 = vmatprep.subr.mxu0 0.0
        %1444 = vmatpush1.msra.mxu0 0.0
        %1445 = vmatprep.subr.mxu0 0.0
        %1446 = vmatpush1.msra.mxu0 0.0
        %1447 = vmatprep.subr.mxu0 0.0
        %1448 = vmatpush1.msra.mxu0 0.0
        %1449 = vmatprep.subr.mxu0 0.0
        %1450 = vmatpush1.msra.mxu0 0.0
        %1451 = vmatprep.subr.mxu0 0.0
        %1452 = vmatpush1.msra.mxu0 0.0
        %1453 = vmatprep.subr.mxu0 0.0
        %1454 = vmatpush1.msra.mxu0 0.0
        %1455 = vmatprep.subr.mxu0 0.0
        %1456 = vmatpush1.msra.mxu0 0.0
        %1457 = vmatprep.subr.mxu0 0.0
        %1458 = vmatpush1.msra.mxu0 0.0
        %1459 = vmatprep.subr.mxu0 0.0
        %1460 = vmatpush1.msra.mxu0 0.0
        %1461 = vmatprep.subr.mxu0 0.0
        %1462 = vmatpush1.msra.mxu0 0.0
        %1463 = vmatprep.subr.mxu0 0.0
        %1464 = vmatpush1.msra.mxu0 0.0
        %1465 = vmatprep.subr.mxu0 0.0
        %1466 = vmatpush1.msra.mxu0 0.0
        %1467 = vmatprep.subr.mxu0 0.0
        %1468 = vmatpush1.msra.mxu0 0.0
        %1469 = vmatprep.subr.mxu0 0.0
        %1470 = vmatpush1.msra.mxu0 0.0
        %1471 = vmatprep.subr.mxu0 0.0
        %1472 = vmatpush1.msra.mxu0 0.0
        %1473 = vmatprep.subr.mxu0 0.0
        %1474 = vmatpush1.msra.mxu0 0.0
        %1475 = vmatprep.subr.mxu0 0.0
        %1476 = vmatpush1.msra.mxu0 0.0
        %1477 = vmatprep.subr.mxu0 0.0
        %1478 = vmatpush1.msra.mxu0 0.0
        %1479 = vmatprep.subr.mxu0 0.0
        %1480 = vmatpush1.msra.mxu0 0.0
        %1481 = vmatprep.subr.mxu0 0.0
        %1482 = vmatpush1.msra.mxu0 0.0
        %1483 = vmatprep.subr.mxu0 0.0
        %1484 = vmatpush1.msra.mxu0 0.0
        %1485 = vmatprep.subr.mxu0 0.0
        %1486 = vmatpush1.msra.mxu0 0.0
        %1487 = vmatprep.subr.mxu0 0.0
        %1488 = vmatpush1.msra.mxu0 0.0
        %1489 = vmatprep.subr.mxu0 0.0
        %1490 = vmatpush1.msra.mxu0 0.0
        %1491 = vmatprep.subr.mxu0 0.0
        %1492 = vmatpush1.msra.mxu0 0.0
        %1493 = vmatprep.subr.mxu0 0.0
        %1494 = vmatpush1.msra.mxu0 0.0
        %1495 = vmatprep.mubr.f32.mxu0 0.0
        %1496 = vmatmul.mubr.f32.gmra.mrb[0].mxu0 %v1429
        %v1497 = vpop.f32.mrb[0].mxu0
        %v1498 = vadd.f32 0.0, %v1497
        %v1499 = vpop.f32.mrb[0].mxu0
        %1500 = vdwg.mxu0
        %1502 = vrot.lane.b32.xlu0 %v1498, 8
        %v1503 = vpop.permute.xlu0 %1502
        %vm1505 = vcmask 130112
        %1506 = vst.msk [vmem:[#allocation2] sm:$0xff] %vm1505, %v1503
        %1507 = vrot.lane.b32.xlu0 %v760, 112
        %v1508 = vpop.permute.xlu0 %1507
        %1509 = vrot.lane.b32.xlu0 %v844, 112
        %v1510 = vpop.permute.xlu0 %1509
        %v1511 = vsel %vm943, %v1508, 0
        %v1513 = vsel %vm943, %v1510, 0
        %1515 = vmatprep.subr.mxu0 0.0
        %1516 = vmatpush1.xpose.msra.mxu0 %v1513
        %1517 = vmatprep.subr.mxu0 0.0
        %1518 = vmatpush1.xpose.msra.mxu0 0.0
        %1519 = vmatprep.subr.mxu0 0.0
        %1520 = vmatpush1.xpose.msra.mxu0 0.0
        %1521 = vmatprep.subr.mxu0 0.0
        %1522 = vmatpush1.xpose.msra.mxu0 0.0
        %1523 = vmatprep.subr.mxu0 0.0
        %1524 = vmatpush1.xpose.msra.mxu0 0.0
        %1525 = vmatprep.subr.mxu0 0.0
        %1526 = vmatpush1.xpose.msra.mxu0 0.0
        %1527 = vmatprep.subr.mxu0 0.0
        %1528 = vmatpush1.xpose.msra.mxu0 0.0
        %1529 = vmatprep.subr.mxu0 0.0
        %1530 = vmatpush1.xpose.msra.mxu0 0.0
        %1531 = vmatprep.subr.mxu0 0.0
        %1532 = vmatpush1.xpose.msra.mxu0 0.0
        %1533 = vmatprep.subr.mxu0 0.0
        %1534 = vmatpush1.xpose.msra.mxu0 0.0
        %1535 = vmatprep.subr.mxu0 0.0
        %1536 = vmatpush1.xpose.msra.mxu0 0.0
        %1537 = vmatprep.subr.mxu0 0.0
        %1538 = vmatpush1.xpose.msra.mxu0 0.0
        %1539 = vmatprep.subr.mxu0 0.0
        %1540 = vmatpush1.xpose.msra.mxu0 0.0
        %1541 = vmatprep.subr.mxu0 0.0
        %1542 = vmatpush1.xpose.msra.mxu0 0.0
        %1543 = vmatprep.subr.mxu0 0.0
        %1544 = vmatpush1.xpose.msra.mxu0 0.0
        %1545 = vmatprep.subr.mxu0 0.0
        %1546 = vmatpush1.xpose.msra.mxu0 0.0
        %1547 = vmatprep.subr.mxu0 0.0
        %1548 = vmatpush1.xpose.msra.mxu0 0.0
        %1549 = vmatprep.subr.mxu0 0.0
        %1550 = vmatpush1.xpose.msra.mxu0 0.0
        %1551 = vmatprep.subr.mxu0 0.0
        %1552 = vmatpush1.xpose.msra.mxu0 0.0
        %1553 = vmatprep.subr.mxu0 0.0
        %1554 = vmatpush1.xpose.msra.mxu0 0.0
        %1555 = vmatprep.subr.mxu0 0.0
        %1556 = vmatpush1.xpose.msra.mxu0 0.0
        %1557 = vmatprep.subr.mxu0 0.0
        %1558 = vmatpush1.xpose.msra.mxu0 0.0
        %1559 = vmatprep.subr.mxu0 0.0
        %1560 = vmatpush1.xpose.msra.mxu0 0.0
        %1561 = vmatprep.subr.mxu0 0.0
        %1562 = vmatpush1.xpose.msra.mxu0 0.0
        %1563 = vmatprep.subr.mxu0 0.0
        %1564 = vmatpush1.xpose.msra.mxu0 0.0
        %1565 = vmatprep.subr.mxu0 0.0
        %1566 = vmatpush1.xpose.msra.mxu0 0.0
        %1567 = vmatprep.subr.mxu0 0.0
        %1568 = vmatpush1.xpose.msra.mxu0 0.0
        %1569 = vmatprep.subr.mxu0 0.0
        %1570 = vmatpush1.xpose.msra.mxu0 0.0
        %1571 = vmatprep.subr.mxu0 0.0
        %1572 = vmatpush1.xpose.msra.mxu0 0.0
        %1573 = vmatprep.subr.mxu0 0.0
        %1574 = vmatpush1.xpose.msra.mxu0 0.0
        %1575 = vmatprep.subr.mxu0 0.0
        %1576 = vmatpush1.xpose.msra.mxu0 0.0
        %1577 = vmatprep.subr.mxu0 0.0
        %1578 = vmatpush1.xpose.msra.mxu0 0.0
        %1579 = vmatprep.mubr.f32.mxu0 0.0
        %1580 = vmatmul.mubr.f32.gmra.mrb[0].mxu0 %v1511
        %v1581 = vpop.f32.mrb[0].mxu0
        %v1582 = vadd.f32 0.0, %v1581
        %v1583 = vpop.f32.mrb[0].mxu0
        %1584 = vdwg.mxu0
        %v1585 = vmul.f32 %v1582, %v1020
        %v1586 = vsel %vm932, %v1585, -1e+32
        %v1587 = vsel %vm943, %v1586, -inf
        %1588 = vmax.xlane.f32.xlu0 %v1587
        %v1589 = vpop.xlane.xlu0 %1588
        %v1590 = vsub.f32 %v1586, %v1589
        %v1591 = vmul.f32 %v1590, 1.442695
        %v1592 = vpow.pop %v1591
        %v1593 = vsel %vm943, %v1592, 0.0
        %1594 = vadd.xlane.f32.xlu0 %v1593
        %v1595 = vpop.xlane.xlu0 %1594
        %v1596 = vrcp.pop %v1595
        %v1597 = vmul.f32 %v1592, %v1596
        %v1598 = vmul.f32 %v1597, %v931
        %v1600 = vsel %vm943, %v1598, 0
        %1602 = vmatprep.subr.mxu0 0.0
        %1603 = vmatpush1.msra.mxu0 %v942
        %1604 = vmatprep.subr.mxu0 0.0
        %1605 = vmatpush1.msra.mxu0 0.0
        %1606 = vmatprep.subr.mxu0 0.0
        %1607 = vmatpush1.msra.mxu0 0.0
        %1608 = vmatprep.subr.mxu0 0.0
        %1609 = vmatpush1.msra.mxu0 0.0
        %1610 = vmatprep.subr.mxu0 0.0
        %1611 = vmatpush1.msra.mxu0 0.0
        %1612 = vmatprep.subr.mxu0 0.0
        %1613 = vmatpush1.msra.mxu0 0.0
        %1614 = vmatprep.subr.mxu0 0.0
        %1615 = vmatpush1.msra.mxu0 0.0
        %1616 = vmatprep.subr.mxu0 0.0
        %1617 = vmatpush1.msra.mxu0 0.0
        %1618 = vmatprep.subr.mxu0 0.0
        %1619 = vmatpush1.msra.mxu0 0.0
        %1620 = vmatprep.subr.mxu0 0.0
        %1621 = vmatpush1.msra.mxu0 0.0
        %1622 = vmatprep.subr.mxu0 0.0
        %1623 = vmatpush1.msra.mxu0 0.0
        %1624 = vmatprep.subr.mxu0 0.0
        %1625 = vmatpush1.msra.mxu0 0.0
        %1626 = vmatprep.subr.mxu0 0.0
        %1627 = vmatpush1.msra.mxu0 0.0
        %1628 = vmatprep.subr.mxu0 0.0
        %1629 = vmatpush1.msra.mxu0 0.0
        %1630 = vmatprep.subr.mxu0 0.0
        %1631 = vmatpush1.msra.mxu0 0.0
        %1632 = vmatprep.subr.mxu0 0.0
        %1633 = vmatpush1.msra.mxu0 0.0
        %1634 = vmatprep.subr.mxu0 0.0
        %1635 = vmatpush1.msra.mxu0 0.0
        %1636 = vmatprep.subr.mxu0 0.0
        %1637 = vmatpush1.msra.mxu0 0.0
        %1638 = vmatprep.subr.mxu0 0.0
        %1639 = vmatpush1.msra.mxu0 0.0
        %1640 = vmatprep.subr.mxu0 0.0
        %1641 = vmatpush1.msra.mxu0 0.0
        %1642 = vmatprep.subr.mxu0 0.0
        %1643 = vmatpush1.msra.mxu0 0.0
        %1644 = vmatprep.subr.mxu0 0.0
        %1645 = vmatpush1.msra.mxu0 0.0
        %1646 = vmatprep.subr.mxu0 0.0
        %1647 = vmatpush1.msra.mxu0 0.0
        %1648 = vmatprep.subr.mxu0 0.0
        %1649 = vmatpush1.msra.mxu0 0.0
        %1650 = vmatprep.subr.mxu0 0.0
        %1651 = vmatpush1.msra.mxu0 0.0
        %1652 = vmatprep.subr.mxu0 0.0
        %1653 = vmatpush1.msra.mxu0 0.0
        %1654 = vmatprep.subr.mxu0 0.0
        %1655 = vmatpush1.msra.mxu0 0.0
        %1656 = vmatprep.subr.mxu0 0.0
        %1657 = vmatpush1.msra.mxu0 0.0
        %1658 = vmatprep.subr.mxu0 0.0
        %1659 = vmatpush1.msra.mxu0 0.0
        %1660 = vmatprep.subr.mxu0 0.0
        %1661 = vmatpush1.msra.mxu0 0.0
        %1662 = vmatprep.subr.mxu0 0.0
        %1663 = vmatpush1.msra.mxu0 0.0
        %1664 = vmatprep.subr.mxu0 0.0
        %1665 = vmatpush1.msra.mxu0 0.0
        %1666 = vmatprep.mubr.f32.mxu0 0.0
        %1667 = vmatmul.mubr.f32.gmra.mrb[0].mxu0 %v1600
        %v1668 = vpop.f32.mrb[0].mxu0
        %v1669 = vadd.f32 0.0, %v1668
        %v1670 = vpop.f32.mrb[0].mxu0
        %1671 = vdwg.mxu0
        %v1672 = vmul.f32 %v1669, %v939
        %v1673 = vmax.f32 %v1672, 0.0
        %v1674 = vrsqrt.pop %v1673
        %v1675 = vmul.f32 %v1673, %v1674
        %vm1676 = vcmp.eq.f32.partialorder %v1673, inf
        %v1677 = vsel %vm1676, %v1673, %v1675
        %vm1678 = vcmp.eq.f32.partialorder %v1673, 0.0
        %v1679 = vand.u32 %v1673, 2147483648
        %v1680 = vsel %vm1678, %v1679, %v1677
        %v1681 = vld [vmem:[%s12] sm:$0x1]
        %v1683 = vlaneseq
        %v1684 = vshrl.u32 %v1683, 7
        %v1685 = vsub.s32 0, %v1684
        %v1686 = vrot.slane %v1681, %v1685
        %1687 = vset.pattern.permute.xlu0 2
        %1688 = vperm.xlu0 %1687, %v1686
        %v1689 = vpop.permute.xlu0 %1688
        %v1691 = vmul.f32 %v1680, %v1689
        %v1692 = vmul.f32 %v1691, 1.442695
        %v1693 = vpow.pop %v1692
        %v1694 = vmax.f32 %v1693, 1e-05
        %v1695 = vmin.f32 %v1694, 100000.0
        %v1696 = vmul.f32 %v1585, %v1695
        %v1697 = vsel %vm932, %v1696, -1e+32
        %v1698 = vsel %vm943, %v1697, -inf
        %1699 = vmax.xlane.f32.xlu0 %v1698
        %v1700 = vpop.xlane.xlu0 %1699
        %v1701 = vsub.f32 %v1697, %v1700
        %v1702 = vmul.f32 %v1701, 1.442695
        %v1703 = vpow.pop %v1702
        %v1704 = vsel %vm943, %v1703, 0.0
        %1705 = vadd.xlane.f32.xlu0 %v1704
        %v1706 = vpop.xlane.xlu0 %1705
        %v1707 = vrcp.pop %v1706
        %v1708 = vmul.f32 %v1703, %v1707
        %s1709 = scalar_lea.vmem %s674, 16 [#allocation16]
        %1710 = vst.msk [vmem:[%s1709] sm:$0xff] %vm943, %v1708
        %1711 = vrot.lane.b32.xlu0 %v928, 112
        %v1712 = vpop.permute.xlu0 %1711
        %v1715 = vsel %vm943, %v1708, 0
        %1717 = vmatprep.subr.mxu0 0.0
        %1718 = vmatpush1.msra.mxu0 %v1712
        %1719 = vmatprep.subr.mxu0 0.0
        %1720 = vmatpush1.msra.mxu0 0.0
        %1721 = vmatprep.subr.mxu0 0.0
        %1722 = vmatpush1.msra.mxu0 0.0
        %1723 = vmatprep.subr.mxu0 0.0
        %1724 = vmatpush1.msra.mxu0 0.0
        %1725 = vmatprep.subr.mxu0 0.0
        %1726 = vmatpush1.msra.mxu0 0.0
        %1727 = vmatprep.subr.mxu0 0.0
        %1728 = vmatpush1.msra.mxu0 0.0
        %1729 = vmatprep.subr.mxu0 0.0
        %1730 = vmatpush1.msra.mxu0 0.0
        %1731 = vmatprep.subr.mxu0 0.0
        %1732 = vmatpush1.msra.mxu0 0.0
        %1733 = vmatprep.subr.mxu0 0.0
        %1734 = vmatpush1.msra.mxu0 0.0
        %1735 = vmatprep.subr.mxu0 0.0
        %1736 = vmatpush1.msra.mxu0 0.0
        %1737 = vmatprep.subr.mxu0 0.0
        %1738 = vmatpush1.msra.mxu0 0.0
        %1739 = vmatprep.subr.mxu0 0.0
        %1740 = vmatpush1.msra.mxu0 0.0
        %1741 = vmatprep.subr.mxu0 0.0
        %1742 = vmatpush1.msra.mxu0 0.0
        %1743 = vmatprep.subr.mxu0 0.0
        %1744 = vmatpush1.msra.mxu0 0.0
        %1745 = vmatprep.subr.mxu0 0.0
        %1746 = vmatpush1.msra.mxu0 0.0
        %1747 = vmatprep.subr.mxu0 0.0
        %1748 = vmatpush1.msra.mxu0 0.0
        %1749 = vmatprep.subr.mxu0 0.0
        %1750 = vmatpush1.msra.mxu0 0.0
        %1751 = vmatprep.subr.mxu0 0.0
        %1752 = vmatpush1.msra.mxu0 0.0
        %1753 = vmatprep.subr.mxu0 0.0
        %1754 = vmatpush1.msra.mxu0 0.0
        %1755 = vmatprep.subr.mxu0 0.0
        %1756 = vmatpush1.msra.mxu0 0.0
        %1757 = vmatprep.subr.mxu0 0.0
        %1758 = vmatpush1.msra.mxu0 0.0
        %1759 = vmatprep.subr.mxu0 0.0
        %1760 = vmatpush1.msra.mxu0 0.0
        %1761 = vmatprep.subr.mxu0 0.0
        %1762 = vmatpush1.msra.mxu0 0.0
        %1763 = vmatprep.subr.mxu0 0.0
        %1764 = vmatpush1.msra.mxu0 0.0
        %1765 = vmatprep.subr.mxu0 0.0
        %1766 = vmatpush1.msra.mxu0 0.0
        %1767 = vmatprep.subr.mxu0 0.0
        %1768 = vmatpush1.msra.mxu0 0.0
        %1769 = vmatprep.subr.mxu0 0.0
        %1770 = vmatpush1.msra.mxu0 0.0
        %1771 = vmatprep.subr.mxu0 0.0
        %1772 = vmatpush1.msra.mxu0 0.0
        %1773 = vmatprep.subr.mxu0 0.0
        %1774 = vmatpush1.msra.mxu0 0.0
        %1775 = vmatprep.subr.mxu0 0.0
        %1776 = vmatpush1.msra.mxu0 0.0
        %1777 = vmatprep.subr.mxu0 0.0
        %1778 = vmatpush1.msra.mxu0 0.0
        %1779 = vmatprep.subr.mxu0 0.0
        %1780 = vmatpush1.msra.mxu0 0.0
        %1781 = vmatprep.mubr.f32.mxu0 0.0
        %1782 = vmatmul.mubr.f32.gmra.mrb[0].mxu0 %v1715
        %v1783 = vpop.f32.mrb[0].mxu0
        %v1784 = vadd.f32 0.0, %v1783
        %v1785 = vpop.f32.mrb[0].mxu0
        %1786 = vdwg.mxu0
        %1788 = vrot.lane.b32.xlu0 %v1784, 16
        %v1789 = vpop.permute.xlu0 %1788
        %vm1791 = vcmask 195712
        %1792 = vst.msk [vmem:[#allocation2] sm:$0xff] %vm1791, %v1789
        %1793 = vrot.lane.b32.xlu0 %v760, 104
        %v1794 = vpop.permute.xlu0 %1793
        %1795 = vrot.lane.b32.xlu0 %v844, 104
        %v1796 = vpop.permute.xlu0 %1795
        %v1797 = vsel %vm943, %v1794, 0
        %v1799 = vsel %vm943, %v1796, 0
        %1801 = vmatprep.subr.mxu0 0.0
        %1802 = vmatpush1.xpose.msra.mxu0 %v1799
        %1803 = vmatprep.subr.mxu0 0.0
        %1804 = vmatpush1.xpose.msra.mxu0 0.0
        %1805 = vmatprep.subr.mxu0 0.0
        %1806 = vmatpush1.xpose.msra.mxu0 0.0
        %1807 = vmatprep.subr.mxu0 0.0
        %1808 = vmatpush1.xpose.msra.mxu0 0.0
        %1809 = vmatprep.subr.mxu0 0.0
        %1810 = vmatpush1.xpose.msra.mxu0 0.0
        %1811 = vmatprep.subr.mxu0 0.0
        %1812 = vmatpush1.xpose.msra.mxu0 0.0
        %1813 = vmatprep.subr.mxu0 0.0
        %1814 = vmatpush1.xpose.msra.mxu0 0.0
        %1815 = vmatprep.subr.mxu0 0.0
        %1816 = vmatpush1.xpose.msra.mxu0 0.0
        %1817 = vmatprep.subr.mxu0 0.0
        %1818 = vmatpush1.xpose.msra.mxu0 0.0
        %1819 = vmatprep.subr.mxu0 0.0
        %1820 = vmatpush1.xpose.msra.mxu0 0.0
        %1821 = vmatprep.subr.mxu0 0.0
        %1822 = vmatpush1.xpose.msra.mxu0 0.0
        %1823 = vmatprep.subr.mxu0 0.0
        %1824 = vmatpush1.xpose.msra.mxu0 0.0
        %1825 = vmatprep.subr.mxu0 0.0
        %1826 = vmatpush1.xpose.msra.mxu0 0.0
        %1827 = vmatprep.subr.mxu0 0.0
        %1828 = vmatpush1.xpose.msra.mxu0 0.0
        %1829 = vmatprep.subr.mxu0 0.0
        %1830 = vmatpush1.xpose.msra.mxu0 0.0
        %1831 = vmatprep.subr.mxu0 0.0
        %1832 = vmatpush1.xpose.msra.mxu0 0.0
        %1833 = vmatprep.subr.mxu0 0.0
        %1834 = vmatpush1.xpose.msra.mxu0 0.0
        %1835 = vmatprep.subr.mxu0 0.0
        %1836 = vmatpush1.xpose.msra.mxu0 0.0
        %1837 = vmatprep.subr.mxu0 0.0
        %1838 = vmatpush1.xpose.msra.mxu0 0.0
        %1839 = vmatprep.subr.mxu0 0.0
        %1840 = vmatpush1.xpose.msra.mxu0 0.0
        %1841 = vmatprep.subr.mxu0 0.0
        %1842 = vmatpush1.xpose.msra.mxu0 0.0
        %1843 = vmatprep.subr.mxu0 0.0
        %1844 = vmatpush1.xpose.msra.mxu0 0.0
        %1845 = vmatprep.subr.mxu0 0.0
        %1846 = vmatpush1.xpose.msra.mxu0 0.0
        %1847 = vmatprep.subr.mxu0 0.0
        %1848 = vmatpush1.xpose.msra.mxu0 0.0
        %1849 = vmatprep.subr.mxu0 0.0
        %1850 = vmatpush1.xpose.msra.mxu0 0.0
        %1851 = vmatprep.subr.mxu0 0.0
        %1852 = vmatpush1.xpose.msra.mxu0 0.0
        %1853 = vmatprep.subr.mxu0 0.0
        %1854 = vmatpush1.xpose.msra.mxu0 0.0
        %1855 = vmatprep.subr.mxu0 0.0
        %1856 = vmatpush1.xpose.msra.mxu0 0.0
        %1857 = vmatprep.subr.mxu0 0.0
        %1858 = vmatpush1.xpose.msra.mxu0 0.0
        %1859 = vmatprep.subr.mxu0 0.0
        %1860 = vmatpush1.xpose.msra.mxu0 0.0
        %1861 = vmatprep.subr.mxu0 0.0
        %1862 = vmatpush1.xpose.msra.mxu0 0.0
        %1863 = vmatprep.subr.mxu0 0.0
        %1864 = vmatpush1.xpose.msra.mxu0 0.0
        %1865 = vmatprep.mubr.f32.mxu0 0.0
        %1866 = vmatmul.mubr.f32.gmra.mrb[0].mxu0 %v1797
        %v1867 = vpop.f32.mrb[0].mxu0
        %v1868 = vadd.f32 0.0, %v1867
        %v1869 = vpop.f32.mrb[0].mxu0
        %1870 = vdwg.mxu0
        %v1871 = vmul.f32 %v1868, %v1020
        %v1872 = vsel %vm932, %v1871, -1e+32
        %v1873 = vsel %vm943, %v1872, -inf
        %1874 = vmax.xlane.f32.xlu0 %v1873
        %v1875 = vpop.xlane.xlu0 %1874
        %v1876 = vsub.f32 %v1872, %v1875
        %v1877 = vmul.f32 %v1876, 1.442695
        %v1878 = vpow.pop %v1877
        %v1879 = vsel %vm943, %v1878, 0.0
        %1880 = vadd.xlane.f32.xlu0 %v1879
        %v1881 = vpop.xlane.xlu0 %1880
        %v1882 = vrcp.pop %v1881
        %v1883 = vmul.f32 %v1878, %v1882
        %v1884 = vmul.f32 %v1883, %v931
        %v1886 = vsel %vm943, %v1884, 0
        %1888 = vmatprep.subr.mxu0 0.0
        %1889 = vmatpush1.msra.mxu0 %v942
        %1890 = vmatprep.subr.mxu0 0.0
        %1891 = vmatpush1.msra.mxu0 0.0
        %1892 = vmatprep.subr.mxu0 0.0
        %1893 = vmatpush1.msra.mxu0 0.0
        %1894 = vmatprep.subr.mxu0 0.0
        %1895 = vmatpush1.msra.mxu0 0.0
        %1896 = vmatprep.subr.mxu0 0.0
        %1897 = vmatpush1.msra.mxu0 0.0
        %1898 = vmatprep.subr.mxu0 0.0
        %1899 = vmatpush1.msra.mxu0 0.0
        %1900 = vmatprep.subr.mxu0 0.0
        %1901 = vmatpush1.msra.mxu0 0.0
        %1902 = vmatprep.subr.mxu0 0.0
        %1903 = vmatpush1.msra.mxu0 0.0
        %1904 = vmatprep.subr.mxu0 0.0
        %1905 = vmatpush1.msra.mxu0 0.0
        %1906 = vmatprep.subr.mxu0 0.0
        %1907 = vmatpush1.msra.mxu0 0.0
        %1908 = vmatprep.subr.mxu0 0.0
        %1909 = vmatpush1.msra.mxu0 0.0
        %1910 = vmatprep.subr.mxu0 0.0
        %1911 = vmatpush1.msra.mxu0 0.0
        %1912 = vmatprep.subr.mxu0 0.0
        %1913 = vmatpush1.msra.mxu0 0.0
        %1914 = vmatprep.subr.mxu0 0.0
        %1915 = vmatpush1.msra.mxu0 0.0
        %1916 = vmatprep.subr.mxu0 0.0
        %1917 = vmatpush1.msra.mxu0 0.0
        %1918 = vmatprep.subr.mxu0 0.0
        %1919 = vmatpush1.msra.mxu0 0.0
        %1920 = vmatprep.subr.mxu0 0.0
        %1921 = vmatpush1.msra.mxu0 0.0
        %1922 = vmatprep.subr.mxu0 0.0
        %1923 = vmatpush1.msra.mxu0 0.0
        %1924 = vmatprep.subr.mxu0 0.0
        %1925 = vmatpush1.msra.mxu0 0.0
        %1926 = vmatprep.subr.mxu0 0.0
        %1927 = vmatpush1.msra.mxu0 0.0
        %1928 = vmatprep.subr.mxu0 0.0
        %1929 = vmatpush1.msra.mxu0 0.0
        %1930 = vmatprep.subr.mxu0 0.0
        %1931 = vmatpush1.msra.mxu0 0.0
        %1932 = vmatprep.subr.mxu0 0.0
        %1933 = vmatpush1.msra.mxu0 0.0
        %1934 = vmatprep.subr.mxu0 0.0
        %1935 = vmatpush1.msra.mxu0 0.0
        %1936 = vmatprep.subr.mxu0 0.0
        %1937 = vmatpush1.msra.mxu0 0.0
        %1938 = vmatprep.subr.mxu0 0.0
        %1939 = vmatpush1.msra.mxu0 0.0
        %1940 = vmatprep.subr.mxu0 0.0
        %1941 = vmatpush1.msra.mxu0 0.0
        %1942 = vmatprep.subr.mxu0 0.0
        %1943 = vmatpush1.msra.mxu0 0.0
        %1944 = vmatprep.subr.mxu0 0.0
        %1945 = vmatpush1.msra.mxu0 0.0
        %1946 = vmatprep.subr.mxu0 0.0
        %1947 = vmatpush1.msra.mxu0 0.0
        %1948 = vmatprep.subr.mxu0 0.0
        %1949 = vmatpush1.msra.mxu0 0.0
        %1950 = vmatprep.subr.mxu0 0.0
        %1951 = vmatpush1.msra.mxu0 0.0
        %1952 = vmatprep.mubr.f32.mxu0 0.0
        %1953 = vmatmul.mubr.f32.gmra.mrb[0].mxu0 %v1886
        %v1954 = vpop.f32.mrb[0].mxu0
        %v1955 = vadd.f32 0.0, %v1954
        %v1956 = vpop.f32.mrb[0].mxu0
        %1957 = vdwg.mxu0
        %v1958 = vmul.f32 %v1955, %v939
        %v1959 = vmax.f32 %v1958, 0.0
        %v1960 = vrsqrt.pop %v1959
        %v1961 = vmul.f32 %v1959, %v1960
        %vm1962 = vcmp.eq.f32.partialorder %v1959, inf
        %v1963 = vsel %vm1962, %v1959, %v1961
        %vm1964 = vcmp.eq.f32.partialorder %v1959, 0.0
        %v1965 = vand.u32 %v1959, 2147483648
        %v1966 = vsel %vm1964, %v1965, %v1963
        %v1967 = vld [vmem:[%s12] sm:$0x1]
        %v1969 = vlaneseq
        %v1970 = vshrl.u32 %v1969, 7
        %v1971 = vsub.s32 0, %v1970
        %v1972 = vrot.slane %v1967, %v1971
        %1973 = vset.pattern.permute.xlu0 3
        %1974 = vperm.xlu0 %1973, %v1972
        %v1975 = vpop.permute.xlu0 %1974
        %v1977 = vmul.f32 %v1966, %v1975
        %v1978 = vmul.f32 %v1977, 1.442695
        %v1979 = vpow.pop %v1978
        %v1980 = vmax.f32 %v1979, 1e-05
        %v1981 = vmin.f32 %v1980, 100000.0
        %v1982 = vmul.f32 %v1871, %v1981
        %v1983 = vsel %vm932, %v1982, -1e+32
        %v1984 = vsel %vm943, %v1983, -inf
        %1985 = vmax.xlane.f32.xlu0 %v1984
        %v1986 = vpop.xlane.xlu0 %1985
        %v1987 = vsub.f32 %v1983, %v1986
        %v1988 = vmul.f32 %v1987, 1.442695
        %v1989 = vpow.pop %v1988
        %v1990 = vsel %vm943, %v1989, 0.0
        %1991 = vadd.xlane.f32.xlu0 %v1990
        %v1992 = vpop.xlane.xlu0 %1991
        %v1993 = vrcp.pop %v1992
        %v1994 = vmul.f32 %v1989, %v1993
        %s1995 = scalar_lea.vmem %s674, 24 [#allocation16]
        %1996 = vst.msk [vmem:[%s1995] sm:$0xff] %vm943, %v1994
        %1997 = vrot.lane.b32.xlu0 %v928, 104
        %v1998 = vpop.permute.xlu0 %1997
        %v2001 = vsel %vm943, %v1994, 0
        %2003 = vmatprep.subr.mxu0 0.0
        %2004 = vmatpush1.msra.mxu0 %v1998
        %2005 = vmatprep.subr.mxu0 0.0
        %2006 = vmatpush1.msra.mxu0 0.0
        %2007 = vmatprep.subr.mxu0 0.0
        %2008 = vmatpush1.msra.mxu0 0.0
        %2009 = vmatprep.subr.mxu0 0.0
        %2010 = vmatpush1.msra.mxu0 0.0
        %2011 = vmatprep.subr.mxu0 0.0
        %2012 = vmatpush1.msra.mxu0 0.0
        %2013 = vmatprep.subr.mxu0 0.0
        %2014 = vmatpush1.msra.mxu0 0.0
        %2015 = vmatprep.subr.mxu0 0.0
        %2016 = vmatpush1.msra.mxu0 0.0
        %2017 = vmatprep.subr.mxu0 0.0
        %2018 = vmatpush1.msra.mxu0 0.0
        %2019 = vmatprep.subr.mxu0 0.0
        %2020 = vmatpush1.msra.mxu0 0.0
        %2021 = vmatprep.subr.mxu0 0.0
        %2022 = vmatpush1.msra.mxu0 0.0
        %2023 = vmatprep.subr.mxu0 0.0
        %2024 = vmatpush1.msra.mxu0 0.0
        %2025 = vmatprep.subr.mxu0 0.0
        %2026 = vmatpush1.msra.mxu0 0.0
        %2027 = vmatprep.subr.mxu0 0.0
        %2028 = vmatpush1.msra.mxu0 0.0
        %2029 = vmatprep.subr.mxu0 0.0
        %2030 = vmatpush1.msra.mxu0 0.0
        %2031 = vmatprep.subr.mxu0 0.0
        %2032 = vmatpush1.msra.mxu0 0.0
        %2033 = vmatprep.subr.mxu0 0.0
        %2034 = vmatpush1.msra.mxu0 0.0
        %2035 = vmatprep.subr.mxu0 0.0
        %2036 = vmatpush1.msra.mxu0 0.0
        %2037 = vmatprep.subr.mxu0 0.0
        %2038 = vmatpush1.msra.mxu0 0.0
        %2039 = vmatprep.subr.mxu0 0.0
        %2040 = vmatpush1.msra.mxu0 0.0
        %2041 = vmatprep.subr.mxu0 0.0
        %2042 = vmatpush1.msra.mxu0 0.0
        %2043 = vmatprep.subr.mxu0 0.0
        %2044 = vmatpush1.msra.mxu0 0.0
        %2045 = vmatprep.subr.mxu0 0.0
        %2046 = vmatpush1.msra.mxu0 0.0
        %2047 = vmatprep.subr.mxu0 0.0
        %2048 = vmatpush1.msra.mxu0 0.0
        %2049 = vmatprep.subr.mxu0 0.0
        %2050 = vmatpush1.msra.mxu0 0.0
        %2051 = vmatprep.subr.mxu0 0.0
        %2052 = vmatpush1.msra.mxu0 0.0
        %2053 = vmatprep.subr.mxu0 0.0
        %2054 = vmatpush1.msra.mxu0 0.0
        %2055 = vmatprep.subr.mxu0 0.0
        %2056 = vmatpush1.msra.mxu0 0.0
        %2057 = vmatprep.subr.mxu0 0.0
        %2058 = vmatpush1.msra.mxu0 0.0
        %2059 = vmatprep.subr.mxu0 0.0
        %2060 = vmatpush1.msra.mxu0 0.0
        %2061 = vmatprep.subr.mxu0 0.0
        %2062 = vmatpush1.msra.mxu0 0.0
        %2063 = vmatprep.subr.mxu0 0.0
        %2064 = vmatpush1.msra.mxu0 0.0
        %2065 = vmatprep.subr.mxu0 0.0
        %2066 = vmatpush1.msra.mxu0 0.0
        %2067 = vmatprep.mubr.f32.mxu0 0.0
        %2068 = vmatmul.mubr.f32.gmra.mrb[0].mxu0 %v2001
        %v2069 = vpop.f32.mrb[0].mxu0
        %v2070 = vadd.f32 0.0, %v2069
        %v2071 = vpop.f32.mrb[0].mxu0
        %2072 = vdwg.mxu0
        %2074 = vrot.lane.b32.xlu0 %v2070, 24
        %v2075 = vpop.permute.xlu0 %2074
        %vm2077 = vcmask 261312
        %2078 = vst.msk [vmem:[#allocation2] sm:$0xff] %vm2077, %v2075
        %v2079 = vld [vmem:[#allocation2] sm:$0xff]
        %v2080 = vld [vmem:[%s10] sm:$0xff]
        %v2081 = vld [vmem:[%s10 + $0x8] sm:$0xff]
        %v2082 = vld [vmem:[%s10 + $0x10] sm:$0xff]
        %v2083 = vld [vmem:[%s10 + $0x18] sm:$0xff]
        %v2084 = vld [vmem:[%s11] sm:$0x1]
        %v2086 = vlaneseq
        %v2087 = vshrl.u32 %v2086, 7
        %v2088 = vsub.s32 0, %v2087
        %v2089 = vrot.slane %v2084, %v2088
        %v2092 = vsel %vm689, %v2079, 0
        %2094 = vmatprep.subr.mxu0 0.0
        %2095 = vmatpush1.msra.mxu0 %v2080
        %2096 = vmatprep.subr.mxu0 0.0
        %2097 = vmatpush1.msra.mxu0 %v2081
        %2098 = vmatprep.subr.mxu0 0.0
        %2099 = vmatpush1.msra.mxu0 %v2082
        %2100 = vmatprep.subr.mxu0 0.0
        %2101 = vmatpush1.msra.mxu0 %v2083
        %2102 = vmatprep.subr.mxu0 0.0
        %2103 = vmatpush1.msra.mxu0 0.0
        %2104 = vmatprep.subr.mxu0 0.0
        %2105 = vmatpush1.msra.mxu0 0.0
        %2106 = vmatprep.subr.mxu0 0.0
        %2107 = vmatpush1.msra.mxu0 0.0
        %2108 = vmatprep.subr.mxu0 0.0
        %2109 = vmatpush1.msra.mxu0 0.0
        %2110 = vmatprep.subr.mxu0 0.0
        %2111 = vmatpush1.msra.mxu0 0.0
        %2112 = vmatprep.subr.mxu0 0.0
        %2113 = vmatpush1.msra.mxu0 0.0
        %2114 = vmatprep.subr.mxu0 0.0
        %2115 = vmatpush1.msra.mxu0 0.0
        %2116 = vmatprep.subr.mxu0 0.0
        %2117 = vmatpush1.msra.mxu0 0.0
        %2118 = vmatprep.subr.mxu0 0.0
        %2119 = vmatpush1.msra.mxu0 0.0
        %2120 = vmatprep.subr.mxu0 0.0
        %2121 = vmatpush1.msra.mxu0 0.0
        %2122 = vmatprep.subr.mxu0 0.0
        %2123 = vmatpush1.msra.mxu0 0.0
        %2124 = vmatprep.subr.mxu0 0.0
        %2125 = vmatpush1.msra.mxu0 0.0
        %2126 = vmatprep.subr.mxu0 0.0
        %2127 = vmatpush1.msra.mxu0 0.0
        %2128 = vmatprep.subr.mxu0 0.0
        %2129 = vmatpush1.msra.mxu0 0.0
        %2130 = vmatprep.subr.mxu0 0.0
        %2131 = vmatpush1.msra.mxu0 0.0
        %2132 = vmatprep.subr.mxu0 0.0
        %2133 = vmatpush1.msra.mxu0 0.0
        %2134 = vmatprep.subr.mxu0 0.0
        %2135 = vmatpush1.msra.mxu0 0.0
        %2136 = vmatprep.subr.mxu0 0.0
        %2137 = vmatpush1.msra.mxu0 0.0
        %2138 = vmatprep.subr.mxu0 0.0
        %2139 = vmatpush1.msra.mxu0 0.0
        %2140 = vmatprep.subr.mxu0 0.0
        %2141 = vmatpush1.msra.mxu0 0.0
        %2142 = vmatprep.subr.mxu0 0.0
        %2143 = vmatpush1.msra.mxu0 0.0
        %2144 = vmatprep.subr.mxu0 0.0
        %2145 = vmatpush1.msra.mxu0 0.0
        %2146 = vmatprep.subr.mxu0 0.0
        %2147 = vmatpush1.msra.mxu0 0.0
        %2148 = vmatprep.subr.mxu0 0.0
        %2149 = vmatpush1.msra.mxu0 0.0
        %2150 = vmatprep.subr.mxu0 0.0
        %2151 = vmatpush1.msra.mxu0 0.0
        %2152 = vmatprep.subr.mxu0 0.0
        %2153 = vmatpush1.msra.mxu0 0.0
        %2154 = vmatprep.subr.mxu0 0.0
        %2155 = vmatpush1.msra.mxu0 0.0
        %2156 = vmatprep.subr.mxu0 0.0
        %2157 = vmatpush1.msra.mxu0 0.0
        %2158 = vmatprep.mubr.f32.mxu0 0.0
        %2159 = vmatmul.mubr.f32.gmra.mrb[0].mxu0 %v2092
        %v2160 = vpop.f32.mrb[0].mxu0
        %v2161 = vadd.f32 %v2089, %v2160
        %v2162 = vpop.f32.mrb[0].mxu0
        %2163 = vdwg.mxu0
        %v2164 = vadd.f32 %v675, %v2161
        %v2165 = vld [vmem:[%s13] sm:$0x1]
        %v2166 = vld [vmem:[%s14] sm:$0x1]
        %v2167 = vsel %vm689, %v2164, 0.0
        %2168 = vadd.xlane.f32.xlu0 %v2167
        %v2169 = vpop.xlane.xlu0 %2168
        %v2170 = vrcp.pop 32.0
        %v2171 = vmul.f32 %v2169, %v2170
        %v2172 = vsub.f32 %v2164, %v2171
        %v2173 = vmul.f32 %v2172, %v2172
        %v2174 = vsel %vm689, %v2173, 0.0
        %2175 = vadd.xlane.f32.xlu0 %v2174
        %v2176 = vpop.xlane.xlu0 %2175
        %v2177 = vmul.f32 %v2176, %v2170
        %v2178 = vadd.f32 %v2177, 1e-05
        %v2179 = vrsqrt.pop %v2178
        %v2180 = vmul.f32 %v2172, %v2179
        %v2182 = vlaneseq
        %v2183 = vshrl.u32 %v2182, 7
        %v2184 = vsub.s32 0, %v2183
        %v2185 = vrot.slane %v2165, %v2184
        %v2187 = vmul.f32 %v2180, %v2185
        %v2189 = vlaneseq
        %v2190 = vshrl.u32 %v2189, 7
        %v2191 = vsub.s32 0, %v2190
        %v2192 = vrot.slane %v2166, %v2191
        %v2194 = vadd.f32 %v2187, %v2192
        %2195 = vst.msk [vmem:[%s667] sm:$0xff] %vm689, %v2194
        %s2196 = sand.u32 %s380, 1
        %s2197 = scalar_lea.sflag [#allocation5], %s2196
        %s2198 = sand.u32 %s380, 1
        %s2199 = smul.addr %s2198, 8
        %s2200 = scalar_lea.vmem [#allocation15], %s2199
        %s2201 = sand.u32 %s406, 1
        %s2202 = scalar_lea.sflag [#allocation17], %s2201
        %s2203 = sand.u32 %s406, 1
        %s2204 = smul.addr %s2203, 32
        %s2205 = scalar_lea.vmem [#allocation16], %s2204
        // Predicated region
        $region109: #{tpu_custom_call.1} parent=79 // pred_check
          %p2206 = pneg %p390
        $region110: #{tpu_custom_call.1} parent=79 // pred_check_branch
          %2208 = sbr.rel (%p2206) target = $region112
        $region111: #{tpu_custom_call.1} parent=79 // pred_region
          %s2210 = ssub.s32 128, 128
          %2211 = vsyncadd %s2197, %s2210
          %s2212 = smul.addr %s42, 128
          %s2213 = scalar_lea.hbm %s15, %s2212
          %s2215 = sshll.u32 %s2200, 4
          %s2216 = int_to_ptr.vmem [resolvable:$true] %s2215
          %2218 = dma.vmem_to_hbm [thread:$0]  %s2216, 128, %s2213, %s2197
        $region112: #{tpu_custom_call.1} parent=79 // pred_fallthru
          _
        // Predicated region
        $region113: #{tpu_custom_call.1} parent=79 // pred_check
          %p2219 = pneg %p416
        $region114: #{tpu_custom_call.1} parent=79 // pred_check_branch
          %2221 = sbr.rel (%p2219) target = $region116
        $region115: #{tpu_custom_call.1} parent=79 // pred_region
          %s2223 = ssub.s32 512, 512
          %2224 = vsyncadd %s2202, %s2223
          %s2225 = smul.addr %s42, 4
          %s2226 = smul.addr %s2225, 128
          %s2227 = scalar_lea.hbm %s16, %s2226
          %s2228 = sshll.u32 %s2205, 4
          %s2229 = int_to_ptr.vmem [resolvable:$true] %s2228
          %2234 = dma.vmem_to_hbm [thread:$0]  %s2229, 512, %s2227, %s2202, 128, 128, 8
        $region116: #{tpu_custom_call.1} parent=79 // pred_fallthru
          _
      $region80: #{tpu_custom_call.1} parent=5 // pred_fallthru
        _
      %p2235 = scmp.le.s32.totalorder 2, %s37
      // Predicated region
      $region117: #{tpu_custom_call.1} parent=5 // pred_check
        %p2236 = pneg %p2235
      $region118: #{tpu_custom_call.1} parent=5 // pred_check_branch
        %2238 = sbr.rel (%p2236) target = $region120
      $region119: #{tpu_custom_call.1} parent=5 // pred_region
        %s2239 = ssub.s32 %s37, 2
        // Predicated region
        $region121: #{tpu_custom_call.1} parent=119 // pred_check
          %p2240 = pneg %p396
        $region122: #{tpu_custom_call.1} parent=119 // pred_check_branch
          %2242 = sbr.rel (%p2240) target = $region124
        $region123: #{tpu_custom_call.1} parent=119 // pred_region
          %s2243 = sand.u32 %s381, 1
          %s2244 = scalar_lea.sflag [#allocation5], %s2243
          %s2245 = sand.u32 %s381, 1
          %s2246 = smul.addr %s2245, 8
          %s2247 = scalar_lea.vmem [#allocation15], %s2246
          %2248 = dma.done %s2244, 128
        $region124: #{tpu_custom_call.1} parent=119 // pred_fallthru
          _
        // Predicated region
        $region125: #{tpu_custom_call.1} parent=119 // pred_check
          %p2249 = pneg %p422
        $region126: #{tpu_custom_call.1} parent=119 // pred_check_branch
          %2251 = sbr.rel (%p2249) target = $region128
        $region127: #{tpu_custom_call.1} parent=119 // pred_region
          %s2252 = sand.u32 %s407, 1
          %s2253 = scalar_lea.sflag [#allocation17], %s2252
          %s2254 = sand.u32 %s407, 1
          %s2255 = smul.addr %s2254, 32
          %s2256 = scalar_lea.vmem [#allocation16], %s2255
          %2257 = dma.done %s2253, 512
        $region128: #{tpu_custom_call.1} parent=119 // pred_fallthru
          _
      $region120: #{tpu_custom_call.1} parent=5 // pred_fallthru
        _
    $region6: #{tpu_custom_call.1} parent=1 // loop_footer
      %s41 = sadd.s32 1, %s37
    $region7: #{tpu_custom_call.1} parent=1 // loop_footer_branch
      %36 = sbr.rel target = $region3
    $region8: #{tpu_custom_call.1} parent=1 // loop_exit
      _
    %2258 = vsyncpa [#allocation4], 1
    %s2259 = scalar_lea.sflag [#allocation4], 1
    %2260 = vsyncpa %s2259, 1
    %2261 = vsyncpa [#allocation7], 1
    %s2262 = scalar_lea.sflag [#allocation7], 1
    %2263 = vsyncpa %s2262, 1
    %2264 = vsyncpa [#allocation10], 1
    %2265 = vsyncpa [#allocation13], 1
    %2266 = vsyncpa [#allocation5], 1
    %s2267 = scalar_lea.sflag [#allocation5], 1
    %2268 = vsyncpa %s2267, 1
    %2269 = vsyncpa [#allocation17], 1
    %s2270 = scalar_lea.sflag [#allocation17], 1
    %2271 = vsyncpa %s2270, 1

</llo_original>
